<compile_context>
chip_gen: v5e
topology: v5e:2x2
jax: 0.10.0
libtpu: 0.0.40
codegen_flags: <defaults>
</compile_context>

<pallas_src>
import jax
import jax.numpy as jnp
from jax.experimental import pallas as pl
from jax.experimental.pallas import tpu as pltpu

# ----------------------------- hyper-parameters -----------------------------
EMBEDDING_LEN = 64      # embedding_len
NCHANNELS = 8           # nchannels
NFILTERS = 1            # nfilters (module default)
KERNEL_SIZE = 5         # kernel_size
POOL_SIZE = 2           # pool_size
OUT_EMBED = 32          # output_embedding_len
HIDDEN = OUT_EMBED * 2  # fc1 output width


def calc_dim(input_dim, kernel_size, pool_size, nfilters):
    res = input_dim
    for _ in range(nfilters + 1):
        res -= kernel_size - 1
        res = res // pool_size
    return res


L1 = EMBEDDING_LEN - KERNEL_SIZE + 1   # 60  (conv1 output length)
P1 = L1 // POOL_SIZE                   # 30  (after pool1)
L2 = P1 - KERNEL_SIZE + 1              # 26  (conv2 output length)
P2 = L2 // POOL_SIZE                   # 13  (after pool2)
FEAT_DIM = NCHANNELS * P2              # 104 (channel-major flatten)


# --------------------- wrapper-side weight preprocessing ---------------------
def _fold_conv1_pool(w1):
    """Fold conv1 taps + the stride-2 pool even/odd selection into two dense
    (C*P1, L) banded matrices (rows are channel-major pooled positions)."""
    w1sq = w1.reshape(NCHANNELS, KERNEL_SIZE).astype(jnp.float32)   # (C, K)
    r = jnp.arange(NCHANNELS * P1)
    c = r // P1                                                      # channel
    u = r % P1                                                       # pooled pos
    j = jnp.arange(EMBEDDING_LEN)

    def band(shift):
        off = j[None, :] - (2 * u + shift)[:, None]                  # (C*P1, L)
        valid = (off >= 0) & (off < KERNEL_SIZE)
        offc = jnp.clip(off, 0, KERNEL_SIZE - 1)
        return jnp.where(valid, w1sq[c[:, None], offc], 0.0)

    return band(0), band(1)                                          # even, odd


def _fold_conv2_pool(w2):
    """Fold conv2 taps + stride-2 pool into two dense (C*P2, C*P1) matrices
    acting on the channel-major stacked stage-1 features."""
    w2f = w2.astype(jnp.float32)                                     # (C, C, K)
    r = jnp.arange(NCHANNELS * P2)
    co = r // P2
    u = r % P2
    s = jnp.arange(NCHANNELS * P1)
    ci = s // P1
    p = s % P1

    def band(shift):
        off = p[None, :] - (2 * u + shift)[:, None]                  # (C*P2, C*P1)
        valid = (off >= 0) & (off < KERNEL_SIZE)
        offc = jnp.clip(off, 0, KERNEL_SIZE - 1)
        vals = w2f[co[:, None], ci[None, :], offc]
        return jnp.where(valid, vals, 0.0)

    return band(0), band(1)                                          # even, odd


def _pick_tile(B):
    """Lane-dense batch tile (multiple of 128) + padded batch size.
    Keeps grid >= 2 so v7x can shard the 'parallel' axis across both TCs."""
    for bm in (1024, 512, 256, 128):
        if B >= 2 * bm:
            ntiles = -(-B // bm)
            return bm, ntiles * bm
    bm = 128
    ntiles = max(2, -(-B // bm))
    return bm, ntiles * bm


# ------------------------------- fused kernel --------------------------------
def fused_kernel(x_ref, w1e_ref, w1o_ref, b1_ref, w2e_ref, w2o_ref, b2_ref,
                 fc1w_ref, fc1b_ref, fc2w_ref, fc2b_ref, o_ref):
    f32 = jnp.float32
    x = x_ref[...]                                                   # (L, bm)

    # stage 1: conv1 + maxpool(2) + relu  (pool folded into even/odd weights)
    ev1 = jnp.dot(w1e_ref[...], x, preferred_element_type=f32)       # (C*P1, bm)
    od1 = jnp.dot(w1o_ref[...], x, preferred_element_type=f32)
    h1 = jnp.maximum(jnp.maximum(ev1, od1) + b1_ref[...], 0.0)       # (C*P1, bm)

    # stage 2: conv2 + maxpool(2) + relu
    # TODO(synk): Dropout1d / F.dropout are identity in eval mode; omitted.
    ev2 = jnp.dot(w2e_ref[...], h1, preferred_element_type=f32)      # (C*P2, bm)
    od2 = jnp.dot(w2o_ref[...], h1, preferred_element_type=f32)
    h2 = jnp.maximum(jnp.maximum(ev2, od2) + b2_ref[...], 0.0)       # (FEAT, bm)

    # fc1 + relu, fc2 — W @ feat form, lane-dense on bm
    z1 = jnp.dot(fc1w_ref[...], h2, preferred_element_type=f32) + fc1b_ref[...]
    z1 = jnp.maximum(z1, 0.0)                                        # (HIDDEN, bm)
    out = jnp.dot(fc2w_ref[...], z1, preferred_element_type=f32) + fc2b_ref[...]
    o_ref[...] = out.astype(o_ref.dtype)                             # (OUT, bm)


# ------------------------------ full forward ---------------------------------
def convolution_layer_forward(x, params):
    """x: (nsamples, nframes, embedding_len) -> (nsamples, nframes, OUT_EMBED)."""
    w1, b1, w2, b2, fc1w, fc1b, fc2w, fc2b = params
    ns, nf, L = x.shape
    B = ns * nf

    # One-time weight folding (outside the kernel hot path).
    W1e, W1o = _fold_conv1_pool(w1)                                  # (C*P1, L)
    W2e, W2o = _fold_conv2_pool(w2)                                  # (C*P2, C*P1)
    b1s = jnp.repeat(b1.astype(jnp.float32), P1).reshape(NCHANNELS * P1, 1)
    b2s = jnp.repeat(b2.astype(jnp.float32), P2).reshape(NCHANNELS * P2, 1)
    fc1w_ = fc1w.astype(jnp.float32)                                 # (HIDDEN, FEAT)
    fc1b_ = fc1b.astype(jnp.float32).reshape(HIDDEN, 1)
    fc2w_ = fc2w.astype(jnp.float32)                                 # (OUT, HIDDEN)
    fc2b_ = fc2b.astype(jnp.float32).reshape(OUT_EMBED, 1)

    # Batch-on-lanes input; pad batch to a multiple of the tile (and >= 2 tiles).
    xT = x.reshape(B, L).astype(jnp.float32).T                       # (L, B)
    bm, Bp = _pick_tile(B)
    if Bp != B:
        xT = jnp.pad(xT, ((0, 0), (0, Bp - B)))
    grid = (Bp // bm,)

    def const(shape):
        return pl.BlockSpec(shape, lambda i: (0, 0))

    outT = pl.pallas_call(
        fused_kernel,
        out_shape=jax.ShapeDtypeStruct((OUT_EMBED, Bp), jnp.float32),
        grid=grid,
        in_specs=[
            pl.BlockSpec((L, bm), lambda i: (0, i)),                 # x tile
            const((NCHANNELS * P1, L)),                              # conv1 even
            const((NCHANNELS * P1, L)),                              # conv1 odd
            const((NCHANNELS * P1, 1)),                              # b1 (stacked)
            const((NCHANNELS * P2, NCHANNELS * P1)),                 # conv2 even
            const((NCHANNELS * P2, NCHANNELS * P1)),                 # conv2 odd
            const((NCHANNELS * P2, 1)),                              # b2 (stacked)
            const((HIDDEN, FEAT_DIM)),                               # fc1 W
            const((HIDDEN, 1)),                                      # fc1 b
            const((OUT_EMBED, HIDDEN)),                              # fc2 W
            const((OUT_EMBED, 1)),                                   # fc2 b
        ],
        out_specs=pl.BlockSpec((OUT_EMBED, bm), lambda i: (0, i)),
        compiler_params=pltpu.CompilerParams(
            dimension_semantics=("parallel",)),
    )(xT, W1e, W1o, b1s, W2e, W2o, b2s, fc1w_, fc1b_, fc2w_, fc2b_)

    out = outT[:, :B].T                                              # (B, OUT)
    return out.reshape(ns, nf, OUT_EMBED)


# ------------------------------ pure-JAX reference ---------------------------
def _maxpool_ncw(y, p):
    B, C, T = y.shape
    P = T // p
    return y[:, :, : P * p].reshape(B, C, P, p).max(axis=-1)


def reference_forward(x, params):
    w1, b1, w2, b2, fc1w, fc1b, fc2w, fc2b = params
    ns, nf, L = x.shape
    xr = x.reshape(ns * nf, 1, L)
    dn = ("NCH", "OIH", "NCH")
    y = jax.lax.conv_general_dilated(xr, w1, (1,), "VALID", dimension_numbers=dn)
    y = y + b1[None, :, None]
    y = jax.nn.relu(_maxpool_ncw(y, POOL_SIZE))
    y = jax.lax.conv_general_dilated(y, w2, (1,), "VALID", dimension_numbers=dn)
    y = y + b2[None, :, None]
    y = jax.nn.relu(_maxpool_ncw(y, POOL_SIZE))
    y = y.reshape(y.shape[0], -1)
    y = jax.nn.relu(y @ fc1w.T + fc1b)
    y = y @ fc2w.T + fc2b
    return y.reshape(ns, nf, -1)


# ----------------------------------- main ------------------------------------
if __name__ == "__main__":
    key = jax.random.PRNGKey(0)
    ks = jax.random.split(key, 9)

    # deterministic synthetic parameters (PyTorch module shapes)
    w1 = jax.random.normal(ks[0], (NCHANNELS, 1, KERNEL_SIZE), jnp.float32) * 0.1
    b1 = jax.random.normal(ks[1], (NCHANNELS,), jnp.float32) * 0.1
    w2 = jax.random.normal(ks[2], (NCHANNELS, NCHANNELS, KERNEL_SIZE), jnp.float32) * 0.1
    b2 = jax.random.normal(ks[3], (NCHANNELS,), jnp.float32) * 0.1
    fc1w = jax.random.normal(ks[4], (HIDDEN, FEAT_DIM), jnp.float32) * 0.1
    fc1b = jax.random.normal(ks[5], (HIDDEN,), jnp.float32) * 0.1
    fc2w = jax.random.normal(ks[6], (OUT_EMBED, HIDDEN), jnp.float32) * 0.1
    fc2b = jax.random.normal(ks[7], (OUT_EMBED,), jnp.float32) * 0.1
    params = (w1, b1, w2, b2, fc1w, fc1b, fc2w, fc2b)

    nsamples, nframes = 2, 4
    x = jax.random.normal(ks[8], (nsamples, nframes, EMBEDDING_LEN), jnp.float32)

    out = convolution_layer_forward(x, params)
    out = jax.block_until_ready(out)

    ref = jax.block_until_ready(reference_forward(x, params))
    assert out.shape == (nsamples, nframes, OUT_EMBED), out.shape
    assert jnp.allclose(out, ref, atol=1e-4, rtol=1e-4), float(jnp.max(jnp.abs(out - ref)))

    print("KERNEL_OK")
</pallas_src>

<mosaic_0001>
module attributes {stable_mosaic.version = 11 : i64} {
  func.func @fused_kernel(%arg0: i32, %arg1: memref<64x128xf32, #tpu.memory_space<vmem>>, %arg2: memref<240x64xf32, #tpu.memory_space<vmem>>, %arg3: memref<240x64xf32, #tpu.memory_space<vmem>>, %arg4: memref<240x1xf32, #tpu.memory_space<vmem>>, %arg5: memref<104x240xf32, #tpu.memory_space<vmem>>, %arg6: memref<104x240xf32, #tpu.memory_space<vmem>>, %arg7: memref<104x1xf32, #tpu.memory_space<vmem>>, %arg8: memref<64x104xf32, #tpu.memory_space<vmem>>, %arg9: memref<64x1xf32, #tpu.memory_space<vmem>>, %arg10: memref<32x64xf32, #tpu.memory_space<vmem>>, %arg11: memref<32x1xf32, #tpu.memory_space<vmem>>, %arg12: memref<32x128xf32, #tpu.memory_space<vmem>>) attributes {dimension_semantics = [#tpu.dimension_semantics<parallel>], iteration_bounds = array<i64: 2>, scalar_prefetch = 0 : i64, scratch_operands = 0 : i64, tpu.core_type = #tpu.core_type<tc>, window_params = [{transform_indices = @transform_0, window_bounds = array<i64: 64, 128>}, {pipeline_mode = #tpu.pipeline_mode<synchronous>, transform_indices = @transform_1, window_bounds = array<i64: 240, 64>}, {pipeline_mode = #tpu.pipeline_mode<synchronous>, transform_indices = @transform_2, window_bounds = array<i64: 240, 64>}, {pipeline_mode = #tpu.pipeline_mode<synchronous>, transform_indices = @transform_3, window_bounds = array<i64: 240, 1>}, {pipeline_mode = #tpu.pipeline_mode<synchronous>, transform_indices = @transform_4, window_bounds = array<i64: 104, 240>}, {pipeline_mode = #tpu.pipeline_mode<synchronous>, transform_indices = @transform_5, window_bounds = array<i64: 104, 240>}, {pipeline_mode = #tpu.pipeline_mode<synchronous>, transform_indices = @transform_6, window_bounds = array<i64: 104, 1>}, {pipeline_mode = #tpu.pipeline_mode<synchronous>, transform_indices = @transform_7, window_bounds = array<i64: 64, 104>}, {pipeline_mode = #tpu.pipeline_mode<synchronous>, transform_indices = @transform_8, window_bounds = array<i64: 64, 1>}, {pipeline_mode = #tpu.pipeline_mode<synchronous>, transform_indices = @transform_9, window_bounds = array<i64: 32, 64>}, {pipeline_mode = #tpu.pipeline_mode<synchronous>, transform_indices = @transform_10, window_bounds = array<i64: 32, 1>}, {transform_indices = @transform_11, window_bounds = array<i64: 32, 128>}]} {
    %c0 = arith.constant 0 : index
    %c0_0 = arith.constant 0 : index
    %0 = vector.load %arg1[%c0, %c0_0] : memref<64x128xf32, #tpu.memory_space<vmem>>, vector<64x128xf32>
    %c0_1 = arith.constant 0 : index
    %c0_2 = arith.constant 0 : index
    %1 = vector.load %arg2[%c0_1, %c0_2] : memref<240x64xf32, #tpu.memory_space<vmem>>, vector<240x64xf32>
    %cst = arith.constant dense<0.000000e+00> : vector<240x128xf32>
    %2 = tpu.matmul %1, %0, %cst {dimension_numbers = #tpu.dot_dimension_numbers<[1], [0], [0], [1], [0, 0, 1, 1], [], []>} : vector<240x64xf32>, vector<64x128xf32>, vector<240x128xf32> -> vector<240x128xf32>
    %c0_3 = arith.constant 0 : index
    %c0_4 = arith.constant 0 : index
    %3 = vector.load %arg3[%c0_3, %c0_4] : memref<240x64xf32, #tpu.memory_space<vmem>>, vector<240x64xf32>
    %cst_5 = arith.constant dense<0.000000e+00> : vector<240x128xf32>
    %4 = tpu.matmul %3, %0, %cst_5 {dimension_numbers = #tpu.dot_dimension_numbers<[1], [0], [0], [1], [0, 0, 1, 1], [], []>} : vector<240x64xf32>, vector<64x128xf32>, vector<240x128xf32> -> vector<240x128xf32>
    %5 = arith.maximumf %2, %4 : vector<240x128xf32>
    %c0_6 = arith.constant 0 : index
    %c0_7 = arith.constant 0 : index
    %6 = vector.load %arg4[%c0_6, %c0_7] : memref<240x1xf32, #tpu.memory_space<vmem>>, vector<240x1xf32>
    %7 = vector.broadcast %6 : vector<240x1xf32> to vector<240x128xf32>
    %8 = arith.addf %5, %7 : vector<240x128xf32>
    %cst_8 = arith.constant 0.000000e+00 : f32
    %9 = vector.broadcast %cst_8 : f32 to vector<240x128xf32>
    %10 = arith.maximumf %8, %9 : vector<240x128xf32>
    %c0_9 = arith.constant 0 : index
    %c0_10 = arith.constant 0 : index
    %11 = vector.load %arg5[%c0_9, %c0_10] : memref<104x240xf32, #tpu.memory_space<vmem>>, vector<104x240xf32>
    %cst_11 = arith.constant dense<0.000000e+00> : vector<104x128xf32>
    %12 = tpu.matmul %11, %10, %cst_11 {dimension_numbers = #tpu.dot_dimension_numbers<[1], [0], [0], [1], [0, 0, 1, 1], [], []>} : vector<104x240xf32>, vector<240x128xf32>, vector<104x128xf32> -> vector<104x128xf32>
    %c0_12 = arith.constant 0 : index
    %c0_13 = arith.constant 0 : index
    %13 = vector.load %arg6[%c0_12, %c0_13] : memref<104x240xf32, #tpu.memory_space<vmem>>, vector<104x240xf32>
    %cst_14 = arith.constant dense<0.000000e+00> : vector<104x128xf32>
    %14 = tpu.matmul %13, %10, %cst_14 {dimension_numbers = #tpu.dot_dimension_numbers<[1], [0], [0], [1], [0, 0, 1, 1], [], []>} : vector<104x240xf32>, vector<240x128xf32>, vector<104x128xf32> -> vector<104x128xf32>
    %15 = arith.maximumf %12, %14 : vector<104x128xf32>
    %c0_15 = arith.constant 0 : index
    %c0_16 = arith.constant 0 : index
    %16 = vector.load %arg7[%c0_15, %c0_16] : memref<104x1xf32, #tpu.memory_space<vmem>>, vector<104x1xf32>
    %17 = vector.broadcast %16 : vector<104x1xf32> to vector<104x128xf32>
    %18 = arith.addf %15, %17 : vector<104x128xf32>
    %cst_17 = arith.constant 0.000000e+00 : f32
    %19 = vector.broadcast %cst_17 : f32 to vector<104x128xf32>
    %20 = arith.maximumf %18, %19 : vector<104x128xf32>
    %c0_18 = arith.constant 0 : index
    %c0_19 = arith.constant 0 : index
    %21 = vector.load %arg8[%c0_18, %c0_19] : memref<64x104xf32, #tpu.memory_space<vmem>>, vector<64x104xf32>
    %cst_20 = arith.constant dense<0.000000e+00> : vector<64x128xf32>
    %22 = tpu.matmul %21, %20, %cst_20 {dimension_numbers = #tpu.dot_dimension_numbers<[1], [0], [0], [1], [0, 0, 1, 1], [], []>} : vector<64x104xf32>, vector<104x128xf32>, vector<64x128xf32> -> vector<64x128xf32>
    %c0_21 = arith.constant 0 : index
    %c0_22 = arith.constant 0 : index
    %23 = vector.load %arg9[%c0_21, %c0_22] : memref<64x1xf32, #tpu.memory_space<vmem>>, vector<64x1xf32>
    %24 = vector.broadcast %23 : vector<64x1xf32> to vector<64x128xf32>
    %25 = arith.addf %22, %24 : vector<64x128xf32>
    %cst_23 = arith.constant 0.000000e+00 : f32
    %26 = vector.broadcast %cst_23 : f32 to vector<64x128xf32>
    %27 = arith.maximumf %25, %26 : vector<64x128xf32>
    %c0_24 = arith.constant 0 : index
    %c0_25 = arith.constant 0 : index
    %28 = vector.load %arg10[%c0_24, %c0_25] : memref<32x64xf32, #tpu.memory_space<vmem>>, vector<32x64xf32>
    %cst_26 = arith.constant dense<0.000000e+00> : vector<32x128xf32>
    %29 = tpu.matmul %28, %27, %cst_26 {dimension_numbers = #tpu.dot_dimension_numbers<[1], [0], [0], [1], [0, 0, 1, 1], [], []>} : vector<32x64xf32>, vector<64x128xf32>, vector<32x128xf32> -> vector<32x128xf32>
    %c0_27 = arith.constant 0 : index
    %c0_28 = arith.constant 0 : index
    %30 = vector.load %arg11[%c0_27, %c0_28] : memref<32x1xf32, #tpu.memory_space<vmem>>, vector<32x1xf32>
    %31 = vector.broadcast %30 : vector<32x1xf32> to vector<32x128xf32>
    %32 = arith.addf %29, %31 : vector<32x128xf32>
    %c0_29 = arith.constant 0 : index
    %c0_30 = arith.constant 0 : index
    %33 = vector.load %arg12[%c0_29, %c0_30] : memref<32x128xf32, #tpu.memory_space<vmem>>, vector<32x128xf32>
    tpu.vector_store %arg12[%c0_29, %c0_30], %32 {strides = array<i32>} : memref<32x128xf32, #tpu.memory_space<vmem>>, vector<32x128xf32>,
    return
  }
  func.func @transform_0(%arg0: i32) -> (i32, i32) {
    %c0_i32 = arith.constant 0 : i32
    %c0_i32_0 = arith.constant 0 : i32
    return %c0_i32, %arg0 : i32, i32
  }
  func.func @transform_1(%arg0: i32) -> (i32, i32) {
    %c0_i32 = arith.constant 0 : i32
    %c0_i32_0 = arith.constant 0 : i32
    %c0_i32_1 = arith.constant 0 : i32
    return %c0_i32, %c0_i32_0 : i32, i32
  }
  func.func @transform_2(%arg0: i32) -> (i32, i32) {
    %c0_i32 = arith.constant 0 : i32
    %c0_i32_0 = arith.constant 0 : i32
    %c0_i32_1 = arith.constant 0 : i32
    return %c0_i32, %c0_i32_0 : i32, i32
  }
  func.func @transform_3(%arg0: i32) -> (i32, i32) {
    %c0_i32 = arith.constant 0 : i32
    %c0_i32_0 = arith.constant 0 : i32
    %c0_i32_1 = arith.constant 0 : i32
    return %c0_i32, %c0_i32_0 : i32, i32
  }
  func.func @transform_4(%arg0: i32) -> (i32, i32) {
    %c0_i32 = arith.constant 0 : i32
    %c0_i32_0 = arith.constant 0 : i32
    %c0_i32_1 = arith.constant 0 : i32
    return %c0_i32, %c0_i32_0 : i32, i32
  }
  func.func @transform_5(%arg0: i32) -> (i32, i32) {
    %c0_i32 = arith.constant 0 : i32
    %c0_i32_0 = arith.constant 0 : i32
    %c0_i32_1 = arith.constant 0 : i32
    return %c0_i32, %c0_i32_0 : i32, i32
  }
  func.func @transform_6(%arg0: i32) -> (i32, i32) {
    %c0_i32 = arith.constant 0 : i32
    %c0_i32_0 = arith.constant 0 : i32
    %c0_i32_1 = arith.constant 0 : i32
    return %c0_i32, %c0_i32_0 : i32, i32
  }
  func.func @transform_7(%arg0: i32) -> (i32, i32) {
    %c0_i32 = arith.constant 0 : i32
    %c0_i32_0 = arith.constant 0 : i32
    %c0_i32_1 = arith.constant 0 : i32
    return %c0_i32, %c0_i32_0 : i32, i32
  }
  func.func @transform_8(%arg0: i32) -> (i32, i32) {
    %c0_i32 = arith.constant 0 : i32
    %c0_i32_0 = arith.constant 0 : i32
    %c0_i32_1 = arith.constant 0 : i32
    return %c0_i32, %c0_i32_0 : i32, i32
  }
  func.func @transform_9(%arg0: i32) -> (i32, i32) {
    %c0_i32 = arith.constant 0 : i32
    %c0_i32_0 = arith.constant 0 : i32
    %c0_i32_1 = arith.constant 0 : i32
    return %c0_i32, %c0_i32_0 : i32, i32
  }
  func.func @transform_10(%arg0: i32) -> (i32, i32) {
    %c0_i32 = arith.constant 0 : i32
    %c0_i32_0 = arith.constant 0 : i32
    %c0_i32_1 = arith.constant 0 : i32
    return %c0_i32, %c0_i32_0 : i32, i32
  }
  func.func @transform_11(%arg0: i32) -> (i32, i32) {
    %c0_i32 = arith.constant 0 : i32
    %c0_i32_0 = arith.constant 0 : i32
    return %c0_i32, %arg0 : i32, i32
  }
}

</mosaic_0001>

<llo_original>
// kernel: tpu_custom_call.1
$region0: #{tpu_custom_call.1}
  #allocation0 [shape = 'u32[]', space=smem, size = 0x4, offset = 0x4, fixed_abs, tag = 'smem constant byte address 0x4 - core index']
  #allocation1 [shape = 'u32[72,128]{1,0:T(1,128)}', space=vmem, size = 0x9000, scoped, tag = 'internal scratch']
  %s0 = inlined_call_operand.vmem [shape: f32[64,256], index: 0, kind: input, shape index: {}]
  %s1 = inlined_call_operand.vmem [shape: f32[240,64], index: 1, kind: input, shape index: {}]
  %s2 = inlined_call_operand.vmem [shape: f32[240,64], index: 2, kind: input, shape index: {}]
  %s3 = inlined_call_operand.vmem [shape: f32[240,1], index: 3, kind: input, shape index: {}]
  %s4 = inlined_call_operand.vmem [shape: f32[104,240], index: 4, kind: input, shape index: {}]
  %s5 = inlined_call_operand.vmem [shape: f32[104,240], index: 5, kind: input, shape index: {}]
  %s6 = inlined_call_operand.vmem [shape: f32[104,1], index: 6, kind: input, shape index: {}]
  %s7 = inlined_call_operand.vmem [shape: f32[64,104], index: 7, kind: input, shape index: {}]
  %s8 = inlined_call_operand.vmem [shape: f32[64,1], index: 8, kind: input, shape index: {}]
  %s9 = inlined_call_operand.vmem [shape: f32[32,64], index: 9, kind: input, shape index: {}]
  %s10 = inlined_call_operand.vmem [shape: f32[32,1], index: 10, kind: input, shape index: {}]
  %s11 = inlined_call_operand.hbm [shape: f32[32,256], index: 11, kind: output, shape index: {}]
  %s12 = sld [smem:[#allocation0]]
  $region115: #{tpu_custom_call.1} parent=0
    _
  %s14 = ssub.s32 1, %s12
  %s15 = scalar_select 0, %s14, %s12
  $region1: #{tpu_custom_call.1} parent=0
    #allocation2 [shape = 'u8[65536]{0}', space=vmem, size = 0x10000, scoped, tag = 'input window, operand 0']
    #allocation3 [shape = 'u8[32768]{0}', space=vmem, size = 0x8000, scoped, tag = 'output window, operand 0']
    #allocation4 [shape = 's32[2]{0}', space=sflag, size = 0x8, scoped, tag = 'scoped memory for tpu_custom_call.1']
    %16 = vsyncpa [#allocation4], 0
    %s17 = scalar_lea.sflag [#allocation4], 1
    %18 = vsyncpa %s17, 0
    loop: start=0, step=1, limit=4
    $region2: #{tpu_custom_call.1} parent=1 // loop_pre_header
      _
    $region3: #{tpu_custom_call.1} parent=1 // loop_header
      %s20 = sphi 0, %s24
      %p21 = scmp.ge.s32.totalorder %s20, 4
      %s30 = sphi 0, %s32
      %s33 = sphi 0, %s30
      %s34 = sphi 0, %s33
      %s50 = sphi 0, %s34
      %s54 = sphi 0, %s54
      %s56 = sphi 0, %s54
      %s57 = sphi 0, %s56
      %s71 = sphi 0, %s57
      %s75 = sphi 0, %s75
      %s77 = sphi 0, %s75
      %s78 = sphi 0, %s77
      %s92 = sphi 0, %s78
      %s96 = sphi 0, %s96
      %s98 = sphi 0, %s96
      %s99 = sphi 0, %s98
      %s113 = sphi 0, %s99
      %s117 = sphi 0, %s117
      %s119 = sphi 0, %s117
      %s120 = sphi 0, %s119
      %s134 = sphi 0, %s120
      %s138 = sphi 0, %s138
      %s140 = sphi 0, %s138
      %s141 = sphi 0, %s140
      %s155 = sphi 0, %s141
      %s159 = sphi 0, %s159
      %s161 = sphi 0, %s159
      %s162 = sphi 0, %s161
      %s176 = sphi 0, %s162
      %s180 = sphi 0, %s180
      %s182 = sphi 0, %s180
      %s183 = sphi 0, %s182
      %s197 = sphi 0, %s183
      %s201 = sphi 0, %s201
      %s203 = sphi 0, %s201
      %s204 = sphi 0, %s203
      %s218 = sphi 0, %s204
      %s222 = sphi 0, %s222
      %s224 = sphi 0, %s222
      %s225 = sphi 0, %s224
      %s239 = sphi 0, %s225
      %s243 = sphi 0, %s243
      %s245 = sphi 0, %s243
      %s246 = sphi 0, %s245
      %s260 = sphi 0, %s246
      %s266 = sphi 0, %s268
      %s269 = sphi 0, %s266
      %s270 = sphi 0, %s269
      %s286 = sphi 0, %s270
    $region4: #{tpu_custom_call.1} parent=1 // loop_header_branch
      %23 = sbr.rel (%p21) target = $region8
    $region5: #{tpu_custom_call.1} parent=1 // loop_body
      %s25 = ssub.s32 %s20, 1
      %s26 = ssub.s32 %s20, 2
      %s27 = sadd.s32 %s20, 1
      %s28 = ssub.s32 %s20, %s27
      %p29 = scmp.eq.s32.totalorder %s28, 0
      %s31 = sadd.s32 %s30, 1
      %s32 = scalar_select %p29, %s30, %s31
      %p35 = pneg %p29
      %p36 = scmp.eq.s32.totalorder %s20, 1
      %p37 = por %p35, %p36
      %p38 = scmp.ne.s32.totalorder %s30, %s33
      %p39 = scmp.eq.s32.totalorder %s20, 0
      %p40 = por %p38, %p39
      %p41 = scmp.ne.s32.totalorder %s30, %s33
      %p42 = scmp.eq.s32.totalorder %s25, 1
      %p43 = por %p41, %p42
      %p44 = scmp.ne.s32.totalorder %s33, %s34
      %p45 = scmp.eq.s32.totalorder %s25, 0
      %p46 = por %p44, %p45
      %p47 = scmp.ne.s32.totalorder %s33, %s34
      %p48 = scmp.eq.s32.totalorder %s26, 1
      %p49 = por %p47, %p48
      %p51 = scmp.ne.s32.totalorder %s34, %s50
      %p52 = scmp.eq.s32.totalorder %s26, 0
      %p53 = por %p51, %p52
      %s55 = sadd.s32 %s54, 1
      %p58 = scmp.eq.s32.totalorder %s20, 1
      %p59 = scmp.ne.s32.totalorder %s54, %s56
      %p60 = scmp.eq.s32.totalorder %s20, 0
      %p61 = por %p59, %p60
      %p62 = scmp.ne.s32.totalorder %s54, %s56
      %p63 = scmp.eq.s32.totalorder %s25, 1
      %p64 = por %p62, %p63
      %p65 = scmp.ne.s32.totalorder %s56, %s57
      %p66 = scmp.eq.s32.totalorder %s25, 0
      %p67 = por %p65, %p66
      %p68 = scmp.ne.s32.totalorder %s56, %s57
      %p69 = scmp.eq.s32.totalorder %s26, 1
      %p70 = por %p68, %p69
      %p72 = scmp.ne.s32.totalorder %s57, %s71
      %p73 = scmp.eq.s32.totalorder %s26, 0
      %p74 = por %p72, %p73
      %s76 = sadd.s32 %s75, 1
      %p79 = scmp.eq.s32.totalorder %s20, 1
      %p80 = scmp.ne.s32.totalorder %s75, %s77
      %p81 = scmp.eq.s32.totalorder %s20, 0
      %p82 = por %p80, %p81
      %p83 = scmp.ne.s32.totalorder %s75, %s77
      %p84 = scmp.eq.s32.totalorder %s25, 1
      %p85 = por %p83, %p84
      %p86 = scmp.ne.s32.totalorder %s77, %s78
      %p87 = scmp.eq.s32.totalorder %s25, 0
      %p88 = por %p86, %p87
      %p89 = scmp.ne.s32.totalorder %s77, %s78
      %p90 = scmp.eq.s32.totalorder %s26, 1
      %p91 = por %p89, %p90
      %p93 = scmp.ne.s32.totalorder %s78, %s92
      %p94 = scmp.eq.s32.totalorder %s26, 0
      %p95 = por %p93, %p94
      %s97 = sadd.s32 %s96, 1
      %p100 = scmp.eq.s32.totalorder %s20, 1
      %p101 = scmp.ne.s32.totalorder %s96, %s98
      %p102 = scmp.eq.s32.totalorder %s20, 0
      %p103 = por %p101, %p102
      %p104 = scmp.ne.s32.totalorder %s96, %s98
      %p105 = scmp.eq.s32.totalorder %s25, 1
      %p106 = por %p104, %p105
      %p107 = scmp.ne.s32.totalorder %s98, %s99
      %p108 = scmp.eq.s32.totalorder %s25, 0
      %p109 = por %p107, %p108
      %p110 = scmp.ne.s32.totalorder %s98, %s99
      %p111 = scmp.eq.s32.totalorder %s26, 1
      %p112 = por %p110, %p111
      %p114 = scmp.ne.s32.totalorder %s99, %s113
      %p115 = scmp.eq.s32.totalorder %s26, 0
      %p116 = por %p114, %p115
      %s118 = sadd.s32 %s117, 1
      %p121 = scmp.eq.s32.totalorder %s20, 1
      %p122 = scmp.ne.s32.totalorder %s117, %s119
      %p123 = scmp.eq.s32.totalorder %s20, 0
      %p124 = por %p122, %p123
      %p125 = scmp.ne.s32.totalorder %s117, %s119
      %p126 = scmp.eq.s32.totalorder %s25, 1
      %p127 = por %p125, %p126
      %p128 = scmp.ne.s32.totalorder %s119, %s120
      %p129 = scmp.eq.s32.totalorder %s25, 0
      %p130 = por %p128, %p129
      %p131 = scmp.ne.s32.totalorder %s119, %s120
      %p132 = scmp.eq.s32.totalorder %s26, 1
      %p133 = por %p131, %p132
      %p135 = scmp.ne.s32.totalorder %s120, %s134
      %p136 = scmp.eq.s32.totalorder %s26, 0
      %p137 = por %p135, %p136
      %s139 = sadd.s32 %s138, 1
      %p142 = scmp.eq.s32.totalorder %s20, 1
      %p143 = scmp.ne.s32.totalorder %s138, %s140
      %p144 = scmp.eq.s32.totalorder %s20, 0
      %p145 = por %p143, %p144
      %p146 = scmp.ne.s32.totalorder %s138, %s140
      %p147 = scmp.eq.s32.totalorder %s25, 1
      %p148 = por %p146, %p147
      %p149 = scmp.ne.s32.totalorder %s140, %s141
      %p150 = scmp.eq.s32.totalorder %s25, 0
      %p151 = por %p149, %p150
      %p152 = scmp.ne.s32.totalorder %s140, %s141
      %p153 = scmp.eq.s32.totalorder %s26, 1
      %p154 = por %p152, %p153
      %p156 = scmp.ne.s32.totalorder %s141, %s155
      %p157 = scmp.eq.s32.totalorder %s26, 0
      %p158 = por %p156, %p157
      %s160 = sadd.s32 %s159, 1
      %p163 = scmp.eq.s32.totalorder %s20, 1
      %p164 = scmp.ne.s32.totalorder %s159, %s161
      %p165 = scmp.eq.s32.totalorder %s20, 0
      %p166 = por %p164, %p165
      %p167 = scmp.ne.s32.totalorder %s159, %s161
      %p168 = scmp.eq.s32.totalorder %s25, 1
      %p169 = por %p167, %p168
      %p170 = scmp.ne.s32.totalorder %s161, %s162
      %p171 = scmp.eq.s32.totalorder %s25, 0
      %p172 = por %p170, %p171
      %p173 = scmp.ne.s32.totalorder %s161, %s162
      %p174 = scmp.eq.s32.totalorder %s26, 1
      %p175 = por %p173, %p174
      %p177 = scmp.ne.s32.totalorder %s162, %s176
      %p178 = scmp.eq.s32.totalorder %s26, 0
      %p179 = por %p177, %p178
      %s181 = sadd.s32 %s180, 1
      %p184 = scmp.eq.s32.totalorder %s20, 1
      %p185 = scmp.ne.s32.totalorder %s180, %s182
      %p186 = scmp.eq.s32.totalorder %s20, 0
      %p187 = por %p185, %p186
      %p188 = scmp.ne.s32.totalorder %s180, %s182
      %p189 = scmp.eq.s32.totalorder %s25, 1
      %p190 = por %p188, %p189
      %p191 = scmp.ne.s32.totalorder %s182, %s183
      %p192 = scmp.eq.s32.totalorder %s25, 0
      %p193 = por %p191, %p192
      %p194 = scmp.ne.s32.totalorder %s182, %s183
      %p195 = scmp.eq.s32.totalorder %s26, 1
      %p196 = por %p194, %p195
      %p198 = scmp.ne.s32.totalorder %s183, %s197
      %p199 = scmp.eq.s32.totalorder %s26, 0
      %p200 = por %p198, %p199
      %s202 = sadd.s32 %s201, 1
      %p205 = scmp.eq.s32.totalorder %s20, 1
      %p206 = scmp.ne.s32.totalorder %s201, %s203
      %p207 = scmp.eq.s32.totalorder %s20, 0
      %p208 = por %p206, %p207
      %p209 = scmp.ne.s32.totalorder %s201, %s203
      %p210 = scmp.eq.s32.totalorder %s25, 1
      %p211 = por %p209, %p210
      %p212 = scmp.ne.s32.totalorder %s203, %s204
      %p213 = scmp.eq.s32.totalorder %s25, 0
      %p214 = por %p212, %p213
      %p215 = scmp.ne.s32.totalorder %s203, %s204
      %p216 = scmp.eq.s32.totalorder %s26, 1
      %p217 = por %p215, %p216
      %p219 = scmp.ne.s32.totalorder %s204, %s218
      %p220 = scmp.eq.s32.totalorder %s26, 0
      %p221 = por %p219, %p220
      %s223 = sadd.s32 %s222, 1
      %p226 = scmp.eq.s32.totalorder %s20, 1
      %p227 = scmp.ne.s32.totalorder %s222, %s224
      %p228 = scmp.eq.s32.totalorder %s20, 0
      %p229 = por %p227, %p228
      %p230 = scmp.ne.s32.totalorder %s222, %s224
      %p231 = scmp.eq.s32.totalorder %s25, 1
      %p232 = por %p230, %p231
      %p233 = scmp.ne.s32.totalorder %s224, %s225
      %p234 = scmp.eq.s32.totalorder %s25, 0
      %p235 = por %p233, %p234
      %p236 = scmp.ne.s32.totalorder %s224, %s225
      %p237 = scmp.eq.s32.totalorder %s26, 1
      %p238 = por %p236, %p237
      %p240 = scmp.ne.s32.totalorder %s225, %s239
      %p241 = scmp.eq.s32.totalorder %s26, 0
      %p242 = por %p240, %p241
      %s244 = sadd.s32 %s243, 1
      %p247 = scmp.eq.s32.totalorder %s20, 1
      %p248 = scmp.ne.s32.totalorder %s243, %s245
      %p249 = scmp.eq.s32.totalorder %s20, 0
      %p250 = por %p248, %p249
      %p251 = scmp.ne.s32.totalorder %s243, %s245
      %p252 = scmp.eq.s32.totalorder %s25, 1
      %p253 = por %p251, %p252
      %p254 = scmp.ne.s32.totalorder %s245, %s246
      %p255 = scmp.eq.s32.totalorder %s25, 0
      %p256 = por %p254, %p255
      %p257 = scmp.ne.s32.totalorder %s245, %s246
      %p258 = scmp.eq.s32.totalorder %s26, 1
      %p259 = por %p257, %p258
      %p261 = scmp.ne.s32.totalorder %s246, %s260
      %p262 = scmp.eq.s32.totalorder %s26, 0
      %p263 = por %p261, %p262
      %s264 = ssub.s32 %s20, %s27
      %p265 = scmp.eq.s32.totalorder %s264, 0
      %s267 = sadd.s32 %s266, 1
      %s268 = scalar_select %p265, %s266, %s267
      %p271 = pneg %p265
      %p272 = scmp.eq.s32.totalorder %s20, 1
      %p273 = por %p271, %p272
      %p274 = scmp.ne.s32.totalorder %s266, %s269
      %p275 = scmp.eq.s32.totalorder %s20, 0
      %p276 = por %p274, %p275
      %p277 = scmp.ne.s32.totalorder %s266, %s269
      %p278 = scmp.eq.s32.totalorder %s25, 1
      %p279 = por %p277, %p278
      %p280 = scmp.ne.s32.totalorder %s269, %s270
      %p281 = scmp.eq.s32.totalorder %s25, 0
      %p282 = por %p280, %p281
      %p283 = scmp.ne.s32.totalorder %s269, %s270
      %p284 = scmp.eq.s32.totalorder %s26, 1
      %p285 = por %p283, %p284
      %p287 = scmp.ne.s32.totalorder %s270, %s286
      %p288 = scmp.eq.s32.totalorder %s26, 0
      %p289 = por %p287, %p288
      %p290 = scmp.le.s32.totalorder 1, %s20
      %p291 = scmp.lt.s32.totalorder %s20, 3
      %p292 = pnand %p290, %p291
      %p293 = pneg %p292
      // Predicated region
      $region9: #{tpu_custom_call.1} parent=5 // pred_check
        _
      $region10: #{tpu_custom_call.1} parent=5 // pred_check_branch
        %295 = sbr.rel (%p292) target = $region12
      $region11: #{tpu_custom_call.1} parent=5 // pred_region
        %s296 = ssub.s32 %s20, 1
        // Predicated region
        $region13: #{tpu_custom_call.1} parent=11 // pred_check
          %p297 = pneg %p67
        $region14: #{tpu_custom_call.1} parent=11 // pred_check_branch
          %299 = sbr.rel (%p297) target = $region16
        $region15: #{tpu_custom_call.1} parent=11 // pred_region
          _
        $region16: #{tpu_custom_call.1} parent=11 // pred_fallthru
          _
        // Predicated region
        $region17: #{tpu_custom_call.1} parent=11 // pred_check
          %p300 = pneg %p88
        $region18: #{tpu_custom_call.1} parent=11 // pred_check_branch
          %302 = sbr.rel (%p300) target = $region20
        $region19: #{tpu_custom_call.1} parent=11 // pred_region
          _
        $region20: #{tpu_custom_call.1} parent=11 // pred_fallthru
          _
        // Predicated region
        $region21: #{tpu_custom_call.1} parent=11 // pred_check
          %p303 = pneg %p109
        $region22: #{tpu_custom_call.1} parent=11 // pred_check_branch
          %305 = sbr.rel (%p303) target = $region24
        $region23: #{tpu_custom_call.1} parent=11 // pred_region
          _
        $region24: #{tpu_custom_call.1} parent=11 // pred_fallthru
          _
        // Predicated region
        $region25: #{tpu_custom_call.1} parent=11 // pred_check
          %p306 = pneg %p130
        $region26: #{tpu_custom_call.1} parent=11 // pred_check_branch
          %308 = sbr.rel (%p306) target = $region28
        $region27: #{tpu_custom_call.1} parent=11 // pred_region
          _
        $region28: #{tpu_custom_call.1} parent=11 // pred_fallthru
          _
        // Predicated region
        $region29: #{tpu_custom_call.1} parent=11 // pred_check
          %p309 = pneg %p151
        $region30: #{tpu_custom_call.1} parent=11 // pred_check_branch
          %311 = sbr.rel (%p309) target = $region32
        $region31: #{tpu_custom_call.1} parent=11 // pred_region
          _
        $region32: #{tpu_custom_call.1} parent=11 // pred_fallthru
          _
        // Predicated region
        $region33: #{tpu_custom_call.1} parent=11 // pred_check
          %p312 = pneg %p172
        $region34: #{tpu_custom_call.1} parent=11 // pred_check_branch
          %314 = sbr.rel (%p312) target = $region36
        $region35: #{tpu_custom_call.1} parent=11 // pred_region
          _
        $region36: #{tpu_custom_call.1} parent=11 // pred_fallthru
          _
        // Predicated region
        $region37: #{tpu_custom_call.1} parent=11 // pred_check
          %p315 = pneg %p193
        $region38: #{tpu_custom_call.1} parent=11 // pred_check_branch
          %317 = sbr.rel (%p315) target = $region40
        $region39: #{tpu_custom_call.1} parent=11 // pred_region
          _
        $region40: #{tpu_custom_call.1} parent=11 // pred_fallthru
          _
        // Predicated region
        $region41: #{tpu_custom_call.1} parent=11 // pred_check
          %p318 = pneg %p214
        $region42: #{tpu_custom_call.1} parent=11 // pred_check_branch
          %320 = sbr.rel (%p318) target = $region44
        $region43: #{tpu_custom_call.1} parent=11 // pred_region
          _
        $region44: #{tpu_custom_call.1} parent=11 // pred_fallthru
          _
        // Predicated region
        $region45: #{tpu_custom_call.1} parent=11 // pred_check
          %p321 = pneg %p235
        $region46: #{tpu_custom_call.1} parent=11 // pred_check_branch
          %323 = sbr.rel (%p321) target = $region48
        $region47: #{tpu_custom_call.1} parent=11 // pred_region
          _
        $region48: #{tpu_custom_call.1} parent=11 // pred_fallthru
          _
        // Predicated region
        $region49: #{tpu_custom_call.1} parent=11 // pred_check
          %p324 = pneg %p256
        $region50: #{tpu_custom_call.1} parent=11 // pred_check_branch
          %326 = sbr.rel (%p324) target = $region52
        $region51: #{tpu_custom_call.1} parent=11 // pred_region
          _
        $region52: #{tpu_custom_call.1} parent=11 // pred_fallthru
          _
      $region12: #{tpu_custom_call.1} parent=5 // pred_fallthru
        _
      %p327 = scmp.lt.s32.totalorder %s20, 2
      // Predicated region
      $region53: #{tpu_custom_call.1} parent=5 // pred_check
        %p328 = pneg %p327
      $region54: #{tpu_custom_call.1} parent=5 // pred_check_branch
        %330 = sbr.rel (%p328) target = $region56
      $region55: #{tpu_custom_call.1} parent=5 // pred_region
        // Predicated region
        $region57: #{tpu_custom_call.1} parent=55 // pred_check
          %p331 = pneg %p40
        $region58: #{tpu_custom_call.1} parent=55 // pred_check_branch
          %333 = sbr.rel (%p331) target = $region60
        $region59: #{tpu_custom_call.1} parent=55 // pred_region
          %s334 = sand.u32 %s30, 1
          %s335 = sand.u32 %s30, 1
          %s336 = smul.addr %s335, 64
          %s337 = scalar_lea.vmem [#allocation2], %s336
          %s338 = smul.addr %s20, 8
          %s339 = scalar_lea.vmem %s0, %s338
          // Predicated region
          $region61: #{tpu_custom_call.1} parent=59 // pred_check
            _
          $region62: #{tpu_custom_call.1} parent=59 // pred_check_branch
            %341 = sbr.rel (0) target = $region64
          $region63: #{tpu_custom_call.1} parent=59 // pred_region
            // Predicated region
            $region65: #{tpu_custom_call.1} parent=63 // pred_check
              _
            $region66: #{tpu_custom_call.1} parent=63 // pred_check_branch
              %343 = sbr.rel (0) target = $region68
            $region67: #{tpu_custom_call.1} parent=63 // pred_region
              // Predicated region
              $region80: #{tpu_custom_call.1} parent=67 // pred_check
                _
              $region81: #{tpu_custom_call.1} parent=67 // pred_check_branch
                %373 = sbr.rel (0) target = $region83
              $region82: #{tpu_custom_call.1} parent=67 // pred_region
                loop: start=0, step=1, limit=1
                $region84: #{tpu_custom_call.1} parent=82 // loop_pre_header
                  _
                $region85: #{tpu_custom_call.1} parent=82 // loop_header
                  %s375 = sphi 0, %s379
                  %p376 = scmp.ge.s32.totalorder %s375, 1
                  %s380 = sphi %s339, %s339
                  %s381 = sphi %s337, %s337
                $region86: #{tpu_custom_call.1} parent=82 // loop_header_branch
                  %378 = sbr.rel (%p376) target = $region90
                $region87: #{tpu_custom_call.1} parent=82 // loop_body
                  %v382 = vld [vmem:[%s380] sm:$0xff]
                  %383 = vst [vmem:[%s381] sm:$0xff] %v382
                  %v384 = vld [vmem:[%s380 + $0x10] sm:$0xff]
                  %385 = vst [vmem:[%s381 + $0x8] sm:$0xff] %v384
                  %v386 = vld [vmem:[%s380 + $0x20] sm:$0xff]
                  %387 = vst [vmem:[%s381 + $0x10] sm:$0xff] %v386
                  %v388 = vld [vmem:[%s380 + $0x30] sm:$0xff]
                  %389 = vst [vmem:[%s381 + $0x18] sm:$0xff] %v388
                  %v390 = vld [vmem:[%s380 + $0x40] sm:$0xff]
                  %391 = vst [vmem:[%s381 + $0x20] sm:$0xff] %v390
                  %v392 = vld [vmem:[%s380 + $0x50] sm:$0xff]
                  %393 = vst [vmem:[%s381 + $0x28] sm:$0xff] %v392
                  %v394 = vld [vmem:[%s380 + $0x60] sm:$0xff]
                  %395 = vst [vmem:[%s381 + $0x30] sm:$0xff] %v394
                  %v396 = vld [vmem:[%s380 + $0x70] sm:$0xff]
                  %397 = vst [vmem:[%s381 + $0x38] sm:$0xff] %v396
                $region88: #{tpu_custom_call.1} parent=82 // loop_footer
                  %s379 = sadd.s32 1, %s375
                $region89: #{tpu_custom_call.1} parent=82 // loop_footer_branch
                  %374 = sbr.rel target = $region85
                $region90: #{tpu_custom_call.1} parent=82 // loop_exit
                  _
              $region83: #{tpu_custom_call.1} parent=67 // pred_fallthru
                _
              // Predicated region
              $region91: #{tpu_custom_call.1} parent=67 // pred_check
                _
              $region92: #{tpu_custom_call.1} parent=67 // pred_check_branch
                %399 = sbr.rel target = $region94
              $region93: #{tpu_custom_call.1} parent=67 // pred_region
                _
              $region94: #{tpu_custom_call.1} parent=67 // pred_fallthru
                _
            $region68: #{tpu_custom_call.1} parent=63 // pred_fallthru
              _
            // Predicated region
            $region69: #{tpu_custom_call.1} parent=63 // pred_check
              _
            $region70: #{tpu_custom_call.1} parent=63 // pred_check_branch
              %345 = sbr.rel target = $region72
            $region71: #{tpu_custom_call.1} parent=63 // pred_region
              %s347 = ssub.s32 256, 1
              loop: start=0, step=1, limit=1
              $region73: #{tpu_custom_call.1} parent=71 // loop_pre_header
                _
              $region74: #{tpu_custom_call.1} parent=71 // loop_header
                %s349 = sphi 0, %s353
                %p350 = scmp.ge.s32.totalorder %s349, 1
                %s354 = sphi %s339, %s339
                %s355 = sphi %s337, %s337
              $region75: #{tpu_custom_call.1} parent=71 // loop_header_branch
                %352 = sbr.rel (%p350) target = $region79
              $region76: #{tpu_custom_call.1} parent=71 // loop_body
                %v356 = vld [vmem:[%s354] sm:%s347]
                %357 = vst [vmem:[%s355] sm:%s347] %v356
                %v358 = vld [vmem:[%s354 + $0x10] sm:%s347]
                %359 = vst [vmem:[%s355 + $0x8] sm:%s347] %v358
                %v360 = vld [vmem:[%s354 + $0x20] sm:%s347]
                %361 = vst [vmem:[%s355 + $0x10] sm:%s347] %v360
                %v362 = vld [vmem:[%s354 + $0x30] sm:%s347]
                %363 = vst [vmem:[%s355 + $0x18] sm:%s347] %v362
                %v364 = vld [vmem:[%s354 + $0x40] sm:%s347]
                %365 = vst [vmem:[%s355 + $0x20] sm:%s347] %v364
                %v366 = vld [vmem:[%s354 + $0x50] sm:%s347]
                %367 = vst [vmem:[%s355 + $0x28] sm:%s347] %v366
                %v368 = vld [vmem:[%s354 + $0x60] sm:%s347]
                %369 = vst [vmem:[%s355 + $0x30] sm:%s347] %v368
                %v370 = vld [vmem:[%s354 + $0x70] sm:%s347]
                %371 = vst [vmem:[%s355 + $0x38] sm:%s347] %v370
              $region77: #{tpu_custom_call.1} parent=71 // loop_footer
                %s353 = sadd.s32 1, %s349
              $region78: #{tpu_custom_call.1} parent=71 // loop_footer_branch
                %348 = sbr.rel target = $region74
              $region79: #{tpu_custom_call.1} parent=71 // loop_exit
                _
            $region72: #{tpu_custom_call.1} parent=63 // pred_fallthru
              _
          $region64: #{tpu_custom_call.1} parent=59 // pred_fallthru
            _
          %400 = vnop
        $region60: #{tpu_custom_call.1} parent=55 // pred_fallthru
          _
      $region56: #{tpu_custom_call.1} parent=5 // pred_fallthru
        _
      %p401 = scmp.le.s32.totalorder 1, %s20
      %p402 = scmp.lt.s32.totalorder %s20, 3
      %p403 = pnand %p401, %p402
      %p404 = pneg %p403
      // Predicated region
      $region95: #{tpu_custom_call.1} parent=5 // pred_check
        _
      $region96: #{tpu_custom_call.1} parent=5 // pred_check_branch
        %406 = sbr.rel (%p403) target = $region98
      $region97: #{tpu_custom_call.1} parent=5 // pred_region
        %s407 = ssub.s32 %s20, 1
        %s408 = sand.u32 %s33, 1
        %s409 = sand.u32 %s33, 1
        %s410 = smul.addr %s409, 64
        %s411 = scalar_lea.vmem [#allocation2], %s410
        // Predicated region
        $region99: #{tpu_custom_call.1} parent=97 // pred_check
          %p412 = pneg %p46
        $region100: #{tpu_custom_call.1} parent=97 // pred_check_branch
          %414 = sbr.rel (%p412) target = $region102
        $region101: #{tpu_custom_call.1} parent=97 // pred_region
          _
        $region102: #{tpu_custom_call.1} parent=97 // pred_fallthru
          _
        %s415 = sand.u32 %s33, 1
        %s416 = sand.u32 %s33, 1
        %s417 = smul.addr %s416, 64
        %s418 = scalar_lea.vmem [#allocation2], %s417
        %p419 = pneg %p46
        %p420 = pneg %p43
        %p421 = pneg %p67
        %p422 = pneg %p64
        %p423 = pneg %p88
        %p424 = pneg %p85
        %p425 = pneg %p109
        %p426 = pneg %p106
        %p427 = pneg %p130
        %p428 = pneg %p127
        %p429 = pneg %p151
        %p430 = pneg %p148
        %p431 = pneg %p172
        %p432 = pneg %p169
        %p433 = pneg %p193
        %p434 = pneg %p190
        %p435 = pneg %p214
        %p436 = pneg %p211
        %p437 = pneg %p235
        %p438 = pneg %p232
        %p439 = pneg %p256
        %p440 = pneg %p253
        %p441 = pneg %p282
        %p442 = pneg %p279
        %s443 = sand.u32 %s269, 1
        %s444 = scalar_lea.sflag [#allocation4], %s443
        %s445 = sand.u32 %s269, 1
        %s446 = smul.addr %s445, 32
        %s447 = scalar_lea.vmem [#allocation3], %s446
        %v448 = vld [vmem:[%s411] sm:$0xff]
        %v449 = vld [vmem:[%s411 + $0x8] sm:$0xff]
        %v450 = vld [vmem:[%s411 + $0x10] sm:$0xff]
        %v451 = vld [vmem:[%s411 + $0x18] sm:$0xff]
        %v452 = vld [vmem:[%s411 + $0x20] sm:$0xff]
        %v453 = vld [vmem:[%s411 + $0x28] sm:$0xff]
        %v454 = vld [vmem:[%s411 + $0x30] sm:$0xff]
        %v455 = vld [vmem:[%s411 + $0x38] sm:$0xff]
        %v456 = vld [vmem:[%s1] sm:$0xff]
        %v457 = vld [vmem:[%s1 + $0x8] sm:$0xff]
        %v458 = vld [vmem:[%s1 + $0x10] sm:$0xff]
        %v459 = vld [vmem:[%s1 + $0x18] sm:$0xff]
        %v460 = vld [vmem:[%s1 + $0x20] sm:$0xff]
        %v461 = vld [vmem:[%s1 + $0x28] sm:$0xff]
        %v462 = vld [vmem:[%s1 + $0x30] sm:$0xff]
        %v463 = vld [vmem:[%s1 + $0x38] sm:$0xff]
        %v464 = vld [vmem:[%s1 + $0x40] sm:$0xff]
        %v465 = vld [vmem:[%s1 + $0x48] sm:$0xff]
        %v466 = vld [vmem:[%s1 + $0x50] sm:$0xff]
        %v467 = vld [vmem:[%s1 + $0x58] sm:$0xff]
        %v468 = vld [vmem:[%s1 + $0x60] sm:$0xff]
        %v469 = vld [vmem:[%s1 + $0x68] sm:$0xff]
        %v470 = vld [vmem:[%s1 + $0x70] sm:$0xff]
        %v471 = vld [vmem:[%s1 + $0x78] sm:$0xff]
        %v472 = vld [vmem:[%s1 + $0x80] sm:$0xff]
        %v473 = vld [vmem:[%s1 + $0x88] sm:$0xff]
        %v474 = vld [vmem:[%s1 + $0x90] sm:$0xff]
        %v475 = vld [vmem:[%s1 + $0x98] sm:$0xff]
        %v476 = vld [vmem:[%s1 + $0xa0] sm:$0xff]
        %v477 = vld [vmem:[%s1 + $0xa8] sm:$0xff]
        %v478 = vld [vmem:[%s1 + $0xb0] sm:$0xff]
        %v479 = vld [vmem:[%s1 + $0xb8] sm:$0xff]
        %v480 = vld [vmem:[%s1 + $0xc0] sm:$0xff]
        %v481 = vld [vmem:[%s1 + $0xc8] sm:$0xff]
        %v482 = vld [vmem:[%s1 + $0xd0] sm:$0xff]
        %v483 = vld [vmem:[%s1 + $0xd8] sm:$0xff]
        %v484 = vld [vmem:[%s1 + $0xe0] sm:$0xff]
        %v485 = vld [vmem:[%s1 + $0xe8] sm:$0xff]
        %vm486 = vcmask 523264
        %v488 = vsel %vm486, %v456, 0
        %v491 = vsel %vm486, %v457, 0
        %v494 = vsel %vm486, %v458, 0
        %v497 = vsel %vm486, %v459, 0
        %v500 = vsel %vm486, %v460, 0
        %v503 = vsel %vm486, %v461, 0
        %v506 = vsel %vm486, %v462, 0
        %v509 = vsel %vm486, %v463, 0
        %v512 = vsel %vm486, %v464, 0
        %v515 = vsel %vm486, %v465, 0
        %v518 = vsel %vm486, %v466, 0
        %v521 = vsel %vm486, %v467, 0
        %v524 = vsel %vm486, %v468, 0
        %v527 = vsel %vm486, %v469, 0
        %v530 = vsel %vm486, %v470, 0
        %v533 = vsel %vm486, %v471, 0
        %v536 = vsel %vm486, %v472, 0
        %v539 = vsel %vm486, %v473, 0
        %v542 = vsel %vm486, %v474, 0
        %v545 = vsel %vm486, %v475, 0
        %v548 = vsel %vm486, %v476, 0
        %v551 = vsel %vm486, %v477, 0
        %v554 = vsel %vm486, %v478, 0
        %v557 = vsel %vm486, %v479, 0
        %v560 = vsel %vm486, %v480, 0
        %v563 = vsel %vm486, %v481, 0
        %v566 = vsel %vm486, %v482, 0
        %v569 = vsel %vm486, %v483, 0
        %v572 = vsel %vm486, %v484, 0
        %v575 = vsel %vm486, %v485, 0
        %577 = vmatpush.msra.mxu0 0.0
        %578 = vmatpush.msra.mxu0 0.0
        %579 = vmatpush.msra.mxu0 0.0
        %580 = vmatpush.msra.mxu0 0.0
        %581 = vmatpush.msra.mxu0 0.0
        %582 = vmatpush.msra.mxu0 0.0
        %583 = vmatpush.msra.mxu0 0.0
        %584 = vmatpush.msra.mxu0 0.0
        %585 = vmatpush.msra.mxu0 %v455
        %586 = vmatpush.msra.mxu0 %v454
        %587 = vmatpush.msra.mxu0 %v453
        %588 = vmatpush.msra.mxu0 %v452
        %589 = vmatpush.msra.mxu0 %v451
        %590 = vmatpush.msra.mxu0 %v450
        %591 = vmatpush.msra.mxu0 %v449
        %592 = vmatpush.msra.mxu0 %v448
        %593 = vmatmul.f32.gmra.mxu0 %v488
        %v594 = vpop.f32.mrf.mxu0
        %v595 = vadd.f32 0.0, %v594
        %596 = vmatmul.f32.gmra.mxu0 %v491
        %v597 = vpop.f32.mrf.mxu0
        %v598 = vadd.f32 0.0, %v597
        %599 = vmatmul.f32.gmra.mxu0 %v494
        %v600 = vpop.f32.mrf.mxu0
        %v601 = vadd.f32 0.0, %v600
        %602 = vmatmul.f32.gmra.mxu0 %v497
        %v603 = vpop.f32.mrf.mxu0
        %v604 = vadd.f32 0.0, %v603
        %605 = vmatmul.f32.gmra.mxu0 %v500
        %v606 = vpop.f32.mrf.mxu0
        %v607 = vadd.f32 0.0, %v606
        %608 = vmatmul.f32.gmra.mxu0 %v503
        %v609 = vpop.f32.mrf.mxu0
        %v610 = vadd.f32 0.0, %v609
        %611 = vmatmul.f32.gmra.mxu0 %v506
        %v612 = vpop.f32.mrf.mxu0
        %v613 = vadd.f32 0.0, %v612
        %614 = vmatmul.f32.gmra.mxu0 %v509
        %v615 = vpop.f32.mrf.mxu0
        %v616 = vadd.f32 0.0, %v615
        %617 = vmatmul.f32.gmra.mxu0 %v512
        %v618 = vpop.f32.mrf.mxu0
        %v619 = vadd.f32 0.0, %v618
        %620 = vmatmul.f32.gmra.mxu0 %v515
        %v621 = vpop.f32.mrf.mxu0
        %v622 = vadd.f32 0.0, %v621
        %623 = vmatmul.f32.gmra.mxu0 %v518
        %v624 = vpop.f32.mrf.mxu0
        %v625 = vadd.f32 0.0, %v624
        %626 = vmatmul.f32.gmra.mxu0 %v521
        %v627 = vpop.f32.mrf.mxu0
        %v628 = vadd.f32 0.0, %v627
        %629 = vmatmul.f32.gmra.mxu0 %v524
        %v630 = vpop.f32.mrf.mxu0
        %v631 = vadd.f32 0.0, %v630
        %632 = vmatmul.f32.gmra.mxu0 %v527
        %v633 = vpop.f32.mrf.mxu0
        %v634 = vadd.f32 0.0, %v633
        %635 = vmatmul.f32.gmra.mxu0 %v530
        %v636 = vpop.f32.mrf.mxu0
        %v637 = vadd.f32 0.0, %v636
        %638 = vmatmul.f32.gmra.mxu0 %v533
        %v639 = vpop.f32.mrf.mxu0
        %v640 = vadd.f32 0.0, %v639
        %641 = vmatmul.f32.gmra.mxu0 %v536
        %v642 = vpop.f32.mrf.mxu0
        %v643 = vadd.f32 0.0, %v642
        %644 = vmatmul.f32.gmra.mxu0 %v539
        %v645 = vpop.f32.mrf.mxu0
        %v646 = vadd.f32 0.0, %v645
        %647 = vmatmul.f32.gmra.mxu0 %v542
        %v648 = vpop.f32.mrf.mxu0
        %v649 = vadd.f32 0.0, %v648
        %650 = vmatmul.f32.gmra.mxu0 %v545
        %v651 = vpop.f32.mrf.mxu0
        %v652 = vadd.f32 0.0, %v651
        %653 = vmatmul.f32.gmra.mxu0 %v548
        %v654 = vpop.f32.mrf.mxu0
        %v655 = vadd.f32 0.0, %v654
        %656 = vmatmul.f32.gmra.mxu0 %v551
        %v657 = vpop.f32.mrf.mxu0
        %v658 = vadd.f32 0.0, %v657
        %659 = vmatmul.f32.gmra.mxu0 %v554
        %v660 = vpop.f32.mrf.mxu0
        %v661 = vadd.f32 0.0, %v660
        %662 = vmatmul.f32.gmra.mxu0 %v557
        %v663 = vpop.f32.mrf.mxu0
        %v664 = vadd.f32 0.0, %v663
        %665 = vmatmul.f32.gmra.mxu0 %v560
        %v666 = vpop.f32.mrf.mxu0
        %v667 = vadd.f32 0.0, %v666
        %668 = vmatmul.f32.gmra.mxu0 %v563
        %v669 = vpop.f32.mrf.mxu0
        %v670 = vadd.f32 0.0, %v669
        %671 = vmatmul.f32.gmra.mxu0 %v566
        %v672 = vpop.f32.mrf.mxu0
        %v673 = vadd.f32 0.0, %v672
        %674 = vmatmul.f32.gmra.mxu0 %v569
        %v675 = vpop.f32.mrf.mxu0
        %v676 = vadd.f32 0.0, %v675
        %677 = vmatmul.f32.gmra.mxu0 %v572
        %v678 = vpop.f32.mrf.mxu0
        %v679 = vadd.f32 0.0, %v678
        %680 = vmatmul.f32.gmra.mxu0 %v575
        %v681 = vpop.f32.mrf.mxu0
        %v682 = vadd.f32 0.0, %v681
        %683 = vdwg.mxu0
        %v684 = vld [vmem:[%s2] sm:$0xff]
        %v685 = vld [vmem:[%s2 + $0x8] sm:$0xff]
        %v686 = vld [vmem:[%s2 + $0x10] sm:$0xff]
        %v687 = vld [vmem:[%s2 + $0x18] sm:$0xff]
        %v688 = vld [vmem:[%s2 + $0x20] sm:$0xff]
        %v689 = vld [vmem:[%s2 + $0x28] sm:$0xff]
        %v690 = vld [vmem:[%s2 + $0x30] sm:$0xff]
        %v691 = vld [vmem:[%s2 + $0x38] sm:$0xff]
        %v692 = vld [vmem:[%s2 + $0x40] sm:$0xff]
        %v693 = vld [vmem:[%s2 + $0x48] sm:$0xff]
        %v694 = vld [vmem:[%s2 + $0x50] sm:$0xff]
        %v695 = vld [vmem:[%s2 + $0x58] sm:$0xff]
        %v696 = vld [vmem:[%s2 + $0x60] sm:$0xff]
        %v697 = vld [vmem:[%s2 + $0x68] sm:$0xff]
        %v698 = vld [vmem:[%s2 + $0x70] sm:$0xff]
        %v699 = vld [vmem:[%s2 + $0x78] sm:$0xff]
        %v700 = vld [vmem:[%s2 + $0x80] sm:$0xff]
        %v701 = vld [vmem:[%s2 + $0x88] sm:$0xff]
        %v702 = vld [vmem:[%s2 + $0x90] sm:$0xff]
        %v703 = vld [vmem:[%s2 + $0x98] sm:$0xff]
        %v704 = vld [vmem:[%s2 + $0xa0] sm:$0xff]
        %v705 = vld [vmem:[%s2 + $0xa8] sm:$0xff]
        %v706 = vld [vmem:[%s2 + $0xb0] sm:$0xff]
        %v707 = vld [vmem:[%s2 + $0xb8] sm:$0xff]
        %v708 = vld [vmem:[%s2 + $0xc0] sm:$0xff]
        %v709 = vld [vmem:[%s2 + $0xc8] sm:$0xff]
        %v710 = vld [vmem:[%s2 + $0xd0] sm:$0xff]
        %v711 = vld [vmem:[%s2 + $0xd8] sm:$0xff]
        %v712 = vld [vmem:[%s2 + $0xe0] sm:$0xff]
        %v713 = vld [vmem:[%s2 + $0xe8] sm:$0xff]
        %v715 = vsel %vm486, %v684, 0
        %v718 = vsel %vm486, %v685, 0
        %v721 = vsel %vm486, %v686, 0
        %v724 = vsel %vm486, %v687, 0
        %v727 = vsel %vm486, %v688, 0
        %v730 = vsel %vm486, %v689, 0
        %v733 = vsel %vm486, %v690, 0
        %v736 = vsel %vm486, %v691, 0
        %v739 = vsel %vm486, %v692, 0
        %v742 = vsel %vm486, %v693, 0
        %v745 = vsel %vm486, %v694, 0
        %v748 = vsel %vm486, %v695, 0
        %v751 = vsel %vm486, %v696, 0
        %v754 = vsel %vm486, %v697, 0
        %v757 = vsel %vm486, %v698, 0
        %v760 = vsel %vm486, %v699, 0
        %v763 = vsel %vm486, %v700, 0
        %v766 = vsel %vm486, %v701, 0
        %v769 = vsel %vm486, %v702, 0
        %v772 = vsel %vm486, %v703, 0
        %v775 = vsel %vm486, %v704, 0
        %v778 = vsel %vm486, %v705, 0
        %v781 = vsel %vm486, %v706, 0
        %v784 = vsel %vm486, %v707, 0
        %v787 = vsel %vm486, %v708, 0
        %v790 = vsel %vm486, %v709, 0
        %v793 = vsel %vm486, %v710, 0
        %v796 = vsel %vm486, %v711, 0
        %v799 = vsel %vm486, %v712, 0
        %v802 = vsel %vm486, %v713, 0
        %804 = vmatpush.msra.mxu0 0.0
        %805 = vmatpush.msra.mxu0 0.0
        %806 = vmatpush.msra.mxu0 0.0
        %807 = vmatpush.msra.mxu0 0.0
        %808 = vmatpush.msra.mxu0 0.0
        %809 = vmatpush.msra.mxu0 0.0
        %810 = vmatpush.msra.mxu0 0.0
        %811 = vmatpush.msra.mxu0 0.0
        %812 = vmatpush.msra.mxu0 %v455
        %813 = vmatpush.msra.mxu0 %v454
        %814 = vmatpush.msra.mxu0 %v453
        %815 = vmatpush.msra.mxu0 %v452
        %816 = vmatpush.msra.mxu0 %v451
        %817 = vmatpush.msra.mxu0 %v450
        %818 = vmatpush.msra.mxu0 %v449
        %819 = vmatpush.msra.mxu0 %v448
        %820 = vmatmul.f32.gmra.mxu0 %v715
        %v821 = vpop.f32.mrf.mxu0
        %v822 = vadd.f32 0.0, %v821
        %823 = vmatmul.f32.gmra.mxu0 %v718
        %v824 = vpop.f32.mrf.mxu0
        %v825 = vadd.f32 0.0, %v824
        %826 = vmatmul.f32.gmra.mxu0 %v721
        %v827 = vpop.f32.mrf.mxu0
        %v828 = vadd.f32 0.0, %v827
        %829 = vmatmul.f32.gmra.mxu0 %v724
        %v830 = vpop.f32.mrf.mxu0
        %v831 = vadd.f32 0.0, %v830
        %832 = vmatmul.f32.gmra.mxu0 %v727
        %v833 = vpop.f32.mrf.mxu0
        %v834 = vadd.f32 0.0, %v833
        %835 = vmatmul.f32.gmra.mxu0 %v730
        %v836 = vpop.f32.mrf.mxu0
        %v837 = vadd.f32 0.0, %v836
        %838 = vmatmul.f32.gmra.mxu0 %v733
        %v839 = vpop.f32.mrf.mxu0
        %v840 = vadd.f32 0.0, %v839
        %841 = vmatmul.f32.gmra.mxu0 %v736
        %v842 = vpop.f32.mrf.mxu0
        %v843 = vadd.f32 0.0, %v842
        %844 = vmatmul.f32.gmra.mxu0 %v739
        %v845 = vpop.f32.mrf.mxu0
        %v846 = vadd.f32 0.0, %v845
        %847 = vmatmul.f32.gmra.mxu0 %v742
        %v848 = vpop.f32.mrf.mxu0
        %v849 = vadd.f32 0.0, %v848
        %850 = vmatmul.f32.gmra.mxu0 %v745
        %v851 = vpop.f32.mrf.mxu0
        %v852 = vadd.f32 0.0, %v851
        %853 = vmatmul.f32.gmra.mxu0 %v748
        %v854 = vpop.f32.mrf.mxu0
        %v855 = vadd.f32 0.0, %v854
        %856 = vmatmul.f32.gmra.mxu0 %v751
        %v857 = vpop.f32.mrf.mxu0
        %v858 = vadd.f32 0.0, %v857
        %859 = vmatmul.f32.gmra.mxu0 %v754
        %v860 = vpop.f32.mrf.mxu0
        %v861 = vadd.f32 0.0, %v860
        %862 = vmatmul.f32.gmra.mxu0 %v757
        %v863 = vpop.f32.mrf.mxu0
        %v864 = vadd.f32 0.0, %v863
        %865 = vmatmul.f32.gmra.mxu0 %v760
        %v866 = vpop.f32.mrf.mxu0
        %v867 = vadd.f32 0.0, %v866
        %868 = vmatmul.f32.gmra.mxu0 %v763
        %v869 = vpop.f32.mrf.mxu0
        %v870 = vadd.f32 0.0, %v869
        %871 = vmatmul.f32.gmra.mxu0 %v766
        %v872 = vpop.f32.mrf.mxu0
        %v873 = vadd.f32 0.0, %v872
        %874 = vmatmul.f32.gmra.mxu0 %v769
        %v875 = vpop.f32.mrf.mxu0
        %v876 = vadd.f32 0.0, %v875
        %877 = vmatmul.f32.gmra.mxu0 %v772
        %v878 = vpop.f32.mrf.mxu0
        %v879 = vadd.f32 0.0, %v878
        %880 = vmatmul.f32.gmra.mxu0 %v775
        %v881 = vpop.f32.mrf.mxu0
        %v882 = vadd.f32 0.0, %v881
        %883 = vmatmul.f32.gmra.mxu0 %v778
        %v884 = vpop.f32.mrf.mxu0
        %v885 = vadd.f32 0.0, %v884
        %886 = vmatmul.f32.gmra.mxu0 %v781
        %v887 = vpop.f32.mrf.mxu0
        %v888 = vadd.f32 0.0, %v887
        %889 = vmatmul.f32.gmra.mxu0 %v784
        %v890 = vpop.f32.mrf.mxu0
        %v891 = vadd.f32 0.0, %v890
        %892 = vmatmul.f32.gmra.mxu0 %v787
        %v893 = vpop.f32.mrf.mxu0
        %v894 = vadd.f32 0.0, %v893
        %895 = vmatmul.f32.gmra.mxu0 %v790
        %v896 = vpop.f32.mrf.mxu0
        %v897 = vadd.f32 0.0, %v896
        %898 = vmatmul.f32.gmra.mxu0 %v793
        %v899 = vpop.f32.mrf.mxu0
        %v900 = vadd.f32 0.0, %v899
        %901 = vmatmul.f32.gmra.mxu0 %v796
        %v902 = vpop.f32.mrf.mxu0
        %v903 = vadd.f32 0.0, %v902
        %904 = vmatmul.f32.gmra.mxu0 %v799
        %v905 = vpop.f32.mrf.mxu0
        %v906 = vadd.f32 0.0, %v905
        %907 = vmatmul.f32.gmra.mxu0 %v802
        %v908 = vpop.f32.mrf.mxu0
        %v909 = vadd.f32 0.0, %v908
        %910 = vdwg.mxu0
        %v911 = vmax.f32 %v595, %v822
        %v912 = vmax.f32 %v598, %v825
        %v913 = vmax.f32 %v601, %v828
        %v914 = vmax.f32 %v604, %v831
        %v915 = vmax.f32 %v607, %v834
        %v916 = vmax.f32 %v610, %v837
        %v917 = vmax.f32 %v613, %v840
        %v918 = vmax.f32 %v616, %v843
        %v919 = vmax.f32 %v619, %v846
        %v920 = vmax.f32 %v622, %v849
        %v921 = vmax.f32 %v625, %v852
        %v922 = vmax.f32 %v628, %v855
        %v923 = vmax.f32 %v631, %v858
        %v924 = vmax.f32 %v634, %v861
        %v925 = vmax.f32 %v637, %v864
        %v926 = vmax.f32 %v640, %v867
        %v927 = vmax.f32 %v643, %v870
        %v928 = vmax.f32 %v646, %v873
        %v929 = vmax.f32 %v649, %v876
        %v930 = vmax.f32 %v652, %v879
        %v931 = vmax.f32 %v655, %v882
        %v932 = vmax.f32 %v658, %v885
        %v933 = vmax.f32 %v661, %v888
        %v934 = vmax.f32 %v664, %v891
        %v935 = vmax.f32 %v667, %v894
        %v936 = vmax.f32 %v670, %v897
        %v937 = vmax.f32 %v673, %v900
        %v938 = vmax.f32 %v676, %v903
        %v939 = vmax.f32 %v679, %v906
        %v940 = vmax.f32 %v682, %v909
        %v941 = vld [vmem:[%s3] sm:$0xff]
        %v942 = vld [vmem:[%s3 + $0x8] sm:$0xff]
        %v943 = vld [vmem:[%s3 + $0x10] sm:$0xff]
        %v944 = vld [vmem:[%s3 + $0x18] sm:$0xff]
        %v945 = vld [vmem:[%s3 + $0x20] sm:$0xff]
        %v946 = vld [vmem:[%s3 + $0x28] sm:$0xff]
        %v947 = vld [vmem:[%s3 + $0x30] sm:$0xff]
        %v948 = vld [vmem:[%s3 + $0x38] sm:$0xff]
        %v949 = vld [vmem:[%s3 + $0x40] sm:$0xff]
        %v950 = vld [vmem:[%s3 + $0x48] sm:$0xff]
        %v951 = vld [vmem:[%s3 + $0x50] sm:$0xff]
        %v952 = vld [vmem:[%s3 + $0x58] sm:$0xff]
        %v953 = vld [vmem:[%s3 + $0x60] sm:$0xff]
        %v954 = vld [vmem:[%s3 + $0x68] sm:$0xff]
        %v955 = vld [vmem:[%s3 + $0x70] sm:$0xff]
        %v956 = vld [vmem:[%s3 + $0x78] sm:$0xff]
        %v957 = vld [vmem:[%s3 + $0x80] sm:$0xff]
        %v958 = vld [vmem:[%s3 + $0x88] sm:$0xff]
        %v959 = vld [vmem:[%s3 + $0x90] sm:$0xff]
        %v960 = vld [vmem:[%s3 + $0x98] sm:$0xff]
        %v961 = vld [vmem:[%s3 + $0xa0] sm:$0xff]
        %v962 = vld [vmem:[%s3 + $0xa8] sm:$0xff]
        %v963 = vld [vmem:[%s3 + $0xb0] sm:$0xff]
        %v964 = vld [vmem:[%s3 + $0xb8] sm:$0xff]
        %v965 = vld [vmem:[%s3 + $0xc0] sm:$0xff]
        %v966 = vld [vmem:[%s3 + $0xc8] sm:$0xff]
        %v967 = vld [vmem:[%s3 + $0xd0] sm:$0xff]
        %v968 = vld [vmem:[%s3 + $0xd8] sm:$0xff]
        %v969 = vld [vmem:[%s3 + $0xe0] sm:$0xff]
        %v970 = vld [vmem:[%s3 + $0xe8] sm:$0xff]
        %972 = vset.pattern.permute.xlu0 0
        %973 = vperm.xlu0 %972, %v941
        %v974 = vpop.permute.xlu0 %973
        %977 = vset.pattern.permute.xlu0 0
        %978 = vperm.xlu0 %977, %v942
        %v979 = vpop.permute.xlu0 %978
        %982 = vset.pattern.permute.xlu0 0
        %983 = vperm.xlu0 %982, %v943
        %v984 = vpop.permute.xlu0 %983
        %987 = vset.pattern.permute.xlu0 0
        %988 = vperm.xlu0 %987, %v944
        %v989 = vpop.permute.xlu0 %988
        %992 = vset.pattern.permute.xlu0 0
        %993 = vperm.xlu0 %992, %v945
        %v994 = vpop.permute.xlu0 %993
        %997 = vset.pattern.permute.xlu0 0
        %998 = vperm.xlu0 %997, %v946
        %v999 = vpop.permute.xlu0 %998
        %1002 = vset.pattern.permute.xlu0 0
        %1003 = vperm.xlu0 %1002, %v947
        %v1004 = vpop.permute.xlu0 %1003
        %1007 = vset.pattern.permute.xlu0 0
        %1008 = vperm.xlu0 %1007, %v948
        %v1009 = vpop.permute.xlu0 %1008
        %1012 = vset.pattern.permute.xlu0 0
        %1013 = vperm.xlu0 %1012, %v949
        %v1014 = vpop.permute.xlu0 %1013
        %1017 = vset.pattern.permute.xlu0 0
        %1018 = vperm.xlu0 %1017, %v950
        %v1019 = vpop.permute.xlu0 %1018
        %1022 = vset.pattern.permute.xlu0 0
        %1023 = vperm.xlu0 %1022, %v951
        %v1024 = vpop.permute.xlu0 %1023
        %1027 = vset.pattern.permute.xlu0 0
        %1028 = vperm.xlu0 %1027, %v952
        %v1029 = vpop.permute.xlu0 %1028
        %1032 = vset.pattern.permute.xlu0 0
        %1033 = vperm.xlu0 %1032, %v953
        %v1034 = vpop.permute.xlu0 %1033
        %1037 = vset.pattern.permute.xlu0 0
        %1038 = vperm.xlu0 %1037, %v954
        %v1039 = vpop.permute.xlu0 %1038
        %1042 = vset.pattern.permute.xlu0 0
        %1043 = vperm.xlu0 %1042, %v955
        %v1044 = vpop.permute.xlu0 %1043
        %1047 = vset.pattern.permute.xlu0 0
        %1048 = vperm.xlu0 %1047, %v956
        %v1049 = vpop.permute.xlu0 %1048
        %1052 = vset.pattern.permute.xlu0 0
        %1053 = vperm.xlu0 %1052, %v957
        %v1054 = vpop.permute.xlu0 %1053
        %1057 = vset.pattern.permute.xlu0 0
        %1058 = vperm.xlu0 %1057, %v958
        %v1059 = vpop.permute.xlu0 %1058
        %1062 = vset.pattern.permute.xlu0 0
        %1063 = vperm.xlu0 %1062, %v959
        %v1064 = vpop.permute.xlu0 %1063
        %1067 = vset.pattern.permute.xlu0 0
        %1068 = vperm.xlu0 %1067, %v960
        %v1069 = vpop.permute.xlu0 %1068
        %1072 = vset.pattern.permute.xlu0 0
        %1073 = vperm.xlu0 %1072, %v961
        %v1074 = vpop.permute.xlu0 %1073
        %1077 = vset.pattern.permute.xlu0 0
        %1078 = vperm.xlu0 %1077, %v962
        %v1079 = vpop.permute.xlu0 %1078
        %1082 = vset.pattern.permute.xlu0 0
        %1083 = vperm.xlu0 %1082, %v963
        %v1084 = vpop.permute.xlu0 %1083
        %1087 = vset.pattern.permute.xlu0 0
        %1088 = vperm.xlu0 %1087, %v964
        %v1089 = vpop.permute.xlu0 %1088
        %1092 = vset.pattern.permute.xlu0 0
        %1093 = vperm.xlu0 %1092, %v965
        %v1094 = vpop.permute.xlu0 %1093
        %1097 = vset.pattern.permute.xlu0 0
        %1098 = vperm.xlu0 %1097, %v966
        %v1099 = vpop.permute.xlu0 %1098
        %1102 = vset.pattern.permute.xlu0 0
        %1103 = vperm.xlu0 %1102, %v967
        %v1104 = vpop.permute.xlu0 %1103
        %1107 = vset.pattern.permute.xlu0 0
        %1108 = vperm.xlu0 %1107, %v968
        %v1109 = vpop.permute.xlu0 %1108
        %1112 = vset.pattern.permute.xlu0 0
        %1113 = vperm.xlu0 %1112, %v969
        %v1114 = vpop.permute.xlu0 %1113
        %1117 = vset.pattern.permute.xlu0 0
        %1118 = vperm.xlu0 %1117, %v970
        %v1119 = vpop.permute.xlu0 %1118
        %v1121 = vadd.f32 %v911, %v974
        %v1122 = vadd.f32 %v912, %v979
        %v1123 = vadd.f32 %v913, %v984
        %v1124 = vadd.f32 %v914, %v989
        %v1125 = vadd.f32 %v915, %v994
        %v1126 = vadd.f32 %v916, %v999
        %v1127 = vadd.f32 %v917, %v1004
        %v1128 = vadd.f32 %v918, %v1009
        %v1129 = vadd.f32 %v919, %v1014
        %v1130 = vadd.f32 %v920, %v1019
        %v1131 = vadd.f32 %v921, %v1024
        %v1132 = vadd.f32 %v922, %v1029
        %v1133 = vadd.f32 %v923, %v1034
        %v1134 = vadd.f32 %v924, %v1039
        %v1135 = vadd.f32 %v925, %v1044
        %v1136 = vadd.f32 %v926, %v1049
        %v1137 = vadd.f32 %v927, %v1054
        %v1138 = vadd.f32 %v928, %v1059
        %v1139 = vadd.f32 %v929, %v1064
        %v1140 = vadd.f32 %v930, %v1069
        %v1141 = vadd.f32 %v931, %v1074
        %v1142 = vadd.f32 %v932, %v1079
        %v1143 = vadd.f32 %v933, %v1084
        %v1144 = vadd.f32 %v934, %v1089
        %v1145 = vadd.f32 %v935, %v1094
        %v1146 = vadd.f32 %v936, %v1099
        %v1147 = vadd.f32 %v937, %v1104
        %v1148 = vadd.f32 %v938, %v1109
        %v1149 = vadd.f32 %v939, %v1114
        %v1150 = vadd.f32 %v940, %v1119
        %v1151 = vmax.f32 %v1121, 0.0
        %v1152 = vmax.f32 %v1122, 0.0
        %v1153 = vmax.f32 %v1123, 0.0
        %v1154 = vmax.f32 %v1124, 0.0
        %v1155 = vmax.f32 %v1125, 0.0
        %v1156 = vmax.f32 %v1126, 0.0
        %v1157 = vmax.f32 %v1127, 0.0
        %v1158 = vmax.f32 %v1128, 0.0
        %v1159 = vmax.f32 %v1129, 0.0
        %v1160 = vmax.f32 %v1130, 0.0
        %v1161 = vmax.f32 %v1131, 0.0
        %v1162 = vmax.f32 %v1132, 0.0
        %v1163 = vmax.f32 %v1133, 0.0
        %v1164 = vmax.f32 %v1134, 0.0
        %v1165 = vmax.f32 %v1135, 0.0
        %v1166 = vmax.f32 %v1136, 0.0
        %v1167 = vmax.f32 %v1137, 0.0
        %v1168 = vmax.f32 %v1138, 0.0
        %v1169 = vmax.f32 %v1139, 0.0
        %v1170 = vmax.f32 %v1140, 0.0
        %v1171 = vmax.f32 %v1141, 0.0
        %v1172 = vmax.f32 %v1142, 0.0
        %v1173 = vmax.f32 %v1143, 0.0
        %v1174 = vmax.f32 %v1144, 0.0
        %v1175 = vmax.f32 %v1145, 0.0
        %v1176 = vmax.f32 %v1146, 0.0
        %v1177 = vmax.f32 %v1147, 0.0
        %v1178 = vmax.f32 %v1148, 0.0
        %v1179 = vmax.f32 %v1149, 0.0
        %v1180 = vmax.f32 %v1150, 0.0
        %v1181 = vld [vmem:[%s4] sm:$0xff]
        %v1182 = vld [vmem:[%s4 + $0x8] sm:$0xff]
        %v1183 = vld [vmem:[%s4 + $0x10] sm:$0xff]
        %v1184 = vld [vmem:[%s4 + $0x18] sm:$0xff]
        %v1185 = vld [vmem:[%s4 + $0x20] sm:$0xff]
        %v1186 = vld [vmem:[%s4 + $0x28] sm:$0xff]
        %v1187 = vld [vmem:[%s4 + $0x30] sm:$0xff]
        %v1188 = vld [vmem:[%s4 + $0x38] sm:$0xff]
        %v1189 = vld [vmem:[%s4 + $0x40] sm:$0xff]
        %v1190 = vld [vmem:[%s4 + $0x48] sm:$0xff]
        %v1191 = vld [vmem:[%s4 + $0x50] sm:$0xff]
        %v1192 = vld [vmem:[%s4 + $0x58] sm:$0xff]
        %v1193 = vld [vmem:[%s4 + $0x60] sm:$0xff]
        %v1194 = vld [vmem:[%s4 + $0x68] sm:$0xff]
        %v1195 = vld [vmem:[%s4 + $0x70] sm:$0xff]
        %v1196 = vld [vmem:[%s4 + $0x78] sm:$0xff]
        %v1197 = vld [vmem:[%s4 + $0x80] sm:$0xff]
        %v1198 = vld [vmem:[%s4 + $0x88] sm:$0xff]
        %v1199 = vld [vmem:[%s4 + $0x90] sm:$0xff]
        %v1200 = vld [vmem:[%s4 + $0x98] sm:$0xff]
        %v1201 = vld [vmem:[%s4 + $0xa0] sm:$0xff]
        %v1202 = vld [vmem:[%s4 + $0xa8] sm:$0xff]
        %v1203 = vld [vmem:[%s4 + $0xb0] sm:$0xff]
        %v1204 = vld [vmem:[%s4 + $0xb8] sm:$0xff]
        %v1205 = vld [vmem:[%s4 + $0xc0] sm:$0xff]
        %v1206 = vld [vmem:[%s4 + $0xc8] sm:$0xff]
        %vm1207 = vcmask 916480
        %v1209 = vsel %vm1207, %v1182, 0
        %v1212 = vsel %vm1207, %v1184, 0
        %v1215 = vsel %vm1207, %v1186, 0
        %v1218 = vsel %vm1207, %v1188, 0
        %v1221 = vsel %vm1207, %v1190, 0
        %v1224 = vsel %vm1207, %v1192, 0
        %v1227 = vsel %vm1207, %v1194, 0
        %v1230 = vsel %vm1207, %v1196, 0
        %v1233 = vsel %vm1207, %v1198, 0
        %v1236 = vsel %vm1207, %v1200, 0
        %v1239 = vsel %vm1207, %v1202, 0
        %v1242 = vsel %vm1207, %v1204, 0
        %v1245 = vsel %vm1207, %v1206, 0
        %1247 = vmatpush.msra.mxu0 %v1166
        %1248 = vmatpush.msra.mxu0 %v1165
        %1249 = vmatpush.msra.mxu0 %v1164
        %1250 = vmatpush.msra.mxu0 %v1163
        %1251 = vmatpush.msra.mxu0 %v1162
        %1252 = vmatpush.msra.mxu0 %v1161
        %1253 = vmatpush.msra.mxu0 %v1160
        %1254 = vmatpush.msra.mxu0 %v1159
        %1255 = vmatpush.msra.mxu0 %v1158
        %1256 = vmatpush.msra.mxu0 %v1157
        %1257 = vmatpush.msra.mxu0 %v1156
        %1258 = vmatpush.msra.mxu0 %v1155
        %1259 = vmatpush.msra.mxu0 %v1154
        %1260 = vmatpush.msra.mxu0 %v1153
        %1261 = vmatpush.msra.mxu0 %v1152
        %1262 = vmatpush.msra.mxu0 %v1151
        %1263 = vmatmul.f32.gmra.mxu0 %v1181
        %v1264 = vpop.f32.mrf.mxu0
        %v1265 = vadd.f32 0.0, %v1264
        %1266 = vmatmul.f32.gmra.mxu0 %v1183
        %v1267 = vpop.f32.mrf.mxu0
        %v1268 = vadd.f32 0.0, %v1267
        %1269 = vmatmul.f32.gmra.mxu0 %v1185
        %v1270 = vpop.f32.mrf.mxu0
        %v1271 = vadd.f32 0.0, %v1270
        %1272 = vmatmul.f32.gmra.mxu0 %v1187
        %v1273 = vpop.f32.mrf.mxu0
        %v1274 = vadd.f32 0.0, %v1273
        %1275 = vmatmul.f32.gmra.mxu0 %v1189
        %v1276 = vpop.f32.mrf.mxu0
        %v1277 = vadd.f32 0.0, %v1276
        %1278 = vmatmul.f32.gmra.mxu0 %v1191
        %v1279 = vpop.f32.mrf.mxu0
        %v1280 = vadd.f32 0.0, %v1279
        %1281 = vmatmul.f32.gmra.mxu0 %v1193
        %v1282 = vpop.f32.mrf.mxu0
        %v1283 = vadd.f32 0.0, %v1282
        %1284 = vmatmul.f32.gmra.mxu0 %v1195
        %v1285 = vpop.f32.mrf.mxu0
        %v1286 = vadd.f32 0.0, %v1285
        %1287 = vmatmul.f32.gmra.mxu0 %v1197
        %v1288 = vpop.f32.mrf.mxu0
        %v1289 = vadd.f32 0.0, %v1288
        %1290 = vmatmul.f32.gmra.mxu0 %v1199
        %v1291 = vpop.f32.mrf.mxu0
        %v1292 = vadd.f32 0.0, %v1291
        %1293 = vmatmul.f32.gmra.mxu0 %v1201
        %v1294 = vpop.f32.mrf.mxu0
        %v1295 = vadd.f32 0.0, %v1294
        %1296 = vmatmul.f32.gmra.mxu0 %v1203
        %v1297 = vpop.f32.mrf.mxu0
        %v1298 = vadd.f32 0.0, %v1297
        %1299 = vmatmul.f32.gmra.mxu0 %v1205
        %v1300 = vpop.f32.mrf.mxu0
        %v1301 = vadd.f32 0.0, %v1300
        %1302 = vdwg.mxu0
        %1303 = vmatpush.msra.mxu0 0.0
        %1304 = vmatpush.msra.mxu0 0.0
        %1305 = vmatpush.msra.mxu0 %v1180
        %1306 = vmatpush.msra.mxu0 %v1179
        %1307 = vmatpush.msra.mxu0 %v1178
        %1308 = vmatpush.msra.mxu0 %v1177
        %1309 = vmatpush.msra.mxu0 %v1176
        %1310 = vmatpush.msra.mxu0 %v1175
        %1311 = vmatpush.msra.mxu0 %v1174
        %1312 = vmatpush.msra.mxu0 %v1173
        %1313 = vmatpush.msra.mxu0 %v1172
        %1314 = vmatpush.msra.mxu0 %v1171
        %1315 = vmatpush.msra.mxu0 %v1170
        %1316 = vmatpush.msra.mxu0 %v1169
        %1317 = vmatpush.msra.mxu0 %v1168
        %1318 = vmatpush.msra.mxu0 %v1167
        %1319 = vmatmul.f32.gmra.mxu0 %v1209
        %v1320 = vpop.f32.mrf.mxu0
        %v1321 = vadd.f32 %v1265, %v1320
        %1322 = vmatmul.f32.gmra.mxu0 %v1212
        %v1323 = vpop.f32.mrf.mxu0
        %v1324 = vadd.f32 %v1268, %v1323
        %1325 = vmatmul.f32.gmra.mxu0 %v1215
        %v1326 = vpop.f32.mrf.mxu0
        %v1327 = vadd.f32 %v1271, %v1326
        %1328 = vmatmul.f32.gmra.mxu0 %v1218
        %v1329 = vpop.f32.mrf.mxu0
        %v1330 = vadd.f32 %v1274, %v1329
        %1331 = vmatmul.f32.gmra.mxu0 %v1221
        %v1332 = vpop.f32.mrf.mxu0
        %v1333 = vadd.f32 %v1277, %v1332
        %1334 = vmatmul.f32.gmra.mxu0 %v1224
        %v1335 = vpop.f32.mrf.mxu0
        %v1336 = vadd.f32 %v1280, %v1335
        %1337 = vmatmul.f32.gmra.mxu0 %v1227
        %v1338 = vpop.f32.mrf.mxu0
        %v1339 = vadd.f32 %v1283, %v1338
        %1340 = vmatmul.f32.gmra.mxu0 %v1230
        %v1341 = vpop.f32.mrf.mxu0
        %v1342 = vadd.f32 %v1286, %v1341
        %1343 = vmatmul.f32.gmra.mxu0 %v1233
        %v1344 = vpop.f32.mrf.mxu0
        %v1345 = vadd.f32 %v1289, %v1344
        %1346 = vmatmul.f32.gmra.mxu0 %v1236
        %v1347 = vpop.f32.mrf.mxu0
        %v1348 = vadd.f32 %v1292, %v1347
        %1349 = vmatmul.f32.gmra.mxu0 %v1239
        %v1350 = vpop.f32.mrf.mxu0
        %v1351 = vadd.f32 %v1295, %v1350
        %1352 = vmatmul.f32.gmra.mxu0 %v1242
        %v1353 = vpop.f32.mrf.mxu0
        %v1354 = vadd.f32 %v1298, %v1353
        %1355 = vmatmul.f32.gmra.mxu0 %v1245
        %v1356 = vpop.f32.mrf.mxu0
        %v1357 = vadd.f32 %v1301, %v1356
        %1358 = vdwg.mxu0
        %v1359 = vld [vmem:[%s5] sm:$0xff]
        %v1360 = vld [vmem:[%s5 + $0x8] sm:$0xff]
        %v1361 = vld [vmem:[%s5 + $0x10] sm:$0xff]
        %v1362 = vld [vmem:[%s5 + $0x18] sm:$0xff]
        %v1363 = vld [vmem:[%s5 + $0x20] sm:$0xff]
        %v1364 = vld [vmem:[%s5 + $0x28] sm:$0xff]
        %v1365 = vld [vmem:[%s5 + $0x30] sm:$0xff]
        %v1366 = vld [vmem:[%s5 + $0x38] sm:$0xff]
        %v1367 = vld [vmem:[%s5 + $0x40] sm:$0xff]
        %v1368 = vld [vmem:[%s5 + $0x48] sm:$0xff]
        %v1369 = vld [vmem:[%s5 + $0x50] sm:$0xff]
        %v1370 = vld [vmem:[%s5 + $0x58] sm:$0xff]
        %v1371 = vld [vmem:[%s5 + $0x60] sm:$0xff]
        %v1372 = vld [vmem:[%s5 + $0x68] sm:$0xff]
        %v1373 = vld [vmem:[%s5 + $0x70] sm:$0xff]
        %v1374 = vld [vmem:[%s5 + $0x78] sm:$0xff]
        %v1375 = vld [vmem:[%s5 + $0x80] sm:$0xff]
        %v1376 = vld [vmem:[%s5 + $0x88] sm:$0xff]
        %v1377 = vld [vmem:[%s5 + $0x90] sm:$0xff]
        %v1378 = vld [vmem:[%s5 + $0x98] sm:$0xff]
        %v1379 = vld [vmem:[%s5 + $0xa0] sm:$0xff]
        %v1380 = vld [vmem:[%s5 + $0xa8] sm:$0xff]
        %v1381 = vld [vmem:[%s5 + $0xb0] sm:$0xff]
        %v1382 = vld [vmem:[%s5 + $0xb8] sm:$0xff]
        %v1383 = vld [vmem:[%s5 + $0xc0] sm:$0xff]
        %v1384 = vld [vmem:[%s5 + $0xc8] sm:$0xff]
        %v1386 = vsel %vm1207, %v1360, 0
        %v1389 = vsel %vm1207, %v1362, 0
        %v1392 = vsel %vm1207, %v1364, 0
        %v1395 = vsel %vm1207, %v1366, 0
        %v1398 = vsel %vm1207, %v1368, 0
        %v1401 = vsel %vm1207, %v1370, 0
        %v1404 = vsel %vm1207, %v1372, 0
        %v1407 = vsel %vm1207, %v1374, 0
        %v1410 = vsel %vm1207, %v1376, 0
        %v1413 = vsel %vm1207, %v1378, 0
        %v1416 = vsel %vm1207, %v1380, 0
        %v1419 = vsel %vm1207, %v1382, 0
        %v1422 = vsel %vm1207, %v1384, 0
        %1424 = vmatpush.msra.mxu0 %v1166
        %1425 = vmatpush.msra.mxu0 %v1165
        %1426 = vmatpush.msra.mxu0 %v1164
        %1427 = vmatpush.msra.mxu0 %v1163
        %1428 = vmatpush.msra.mxu0 %v1162
        %1429 = vmatpush.msra.mxu0 %v1161
        %1430 = vmatpush.msra.mxu0 %v1160
        %1431 = vmatpush.msra.mxu0 %v1159
        %1432 = vmatpush.msra.mxu0 %v1158
        %1433 = vmatpush.msra.mxu0 %v1157
        %1434 = vmatpush.msra.mxu0 %v1156
        %1435 = vmatpush.msra.mxu0 %v1155
        %1436 = vmatpush.msra.mxu0 %v1154
        %1437 = vmatpush.msra.mxu0 %v1153
        %1438 = vmatpush.msra.mxu0 %v1152
        %1439 = vmatpush.msra.mxu0 %v1151
        %1440 = vmatmul.f32.gmra.mxu0 %v1359
        %v1441 = vpop.f32.mrf.mxu0
        %v1442 = vadd.f32 0.0, %v1441
        %1443 = vmatmul.f32.gmra.mxu0 %v1361
        %v1444 = vpop.f32.mrf.mxu0
        %v1445 = vadd.f32 0.0, %v1444
        %1446 = vmatmul.f32.gmra.mxu0 %v1363
        %v1447 = vpop.f32.mrf.mxu0
        %v1448 = vadd.f32 0.0, %v1447
        %1449 = vmatmul.f32.gmra.mxu0 %v1365
        %v1450 = vpop.f32.mrf.mxu0
        %v1451 = vadd.f32 0.0, %v1450
        %1452 = vmatmul.f32.gmra.mxu0 %v1367
        %v1453 = vpop.f32.mrf.mxu0
        %v1454 = vadd.f32 0.0, %v1453
        %1455 = vmatmul.f32.gmra.mxu0 %v1369
        %v1456 = vpop.f32.mrf.mxu0
        %v1457 = vadd.f32 0.0, %v1456
        %1458 = vmatmul.f32.gmra.mxu0 %v1371
        %v1459 = vpop.f32.mrf.mxu0
        %v1460 = vadd.f32 0.0, %v1459
        %1461 = vmatmul.f32.gmra.mxu0 %v1373
        %v1462 = vpop.f32.mrf.mxu0
        %v1463 = vadd.f32 0.0, %v1462
        %1464 = vmatmul.f32.gmra.mxu0 %v1375
        %v1465 = vpop.f32.mrf.mxu0
        %v1466 = vadd.f32 0.0, %v1465
        %1467 = vmatmul.f32.gmra.mxu0 %v1377
        %v1468 = vpop.f32.mrf.mxu0
        %v1469 = vadd.f32 0.0, %v1468
        %1470 = vmatmul.f32.gmra.mxu0 %v1379
        %v1471 = vpop.f32.mrf.mxu0
        %v1472 = vadd.f32 0.0, %v1471
        %1473 = vmatmul.f32.gmra.mxu0 %v1381
        %v1474 = vpop.f32.mrf.mxu0
        %v1475 = vadd.f32 0.0, %v1474
        %1476 = vmatmul.f32.gmra.mxu0 %v1383
        %v1477 = vpop.f32.mrf.mxu0
        %v1478 = vadd.f32 0.0, %v1477
        %1479 = vdwg.mxu0
        %1480 = vmatpush.msra.mxu0 0.0
        %1481 = vmatpush.msra.mxu0 0.0
        %1482 = vmatpush.msra.mxu0 %v1180
        %1483 = vmatpush.msra.mxu0 %v1179
        %1484 = vmatpush.msra.mxu0 %v1178
        %1485 = vmatpush.msra.mxu0 %v1177
        %1486 = vmatpush.msra.mxu0 %v1176
        %1487 = vmatpush.msra.mxu0 %v1175
        %1488 = vmatpush.msra.mxu0 %v1174
        %1489 = vmatpush.msra.mxu0 %v1173
        %1490 = vmatpush.msra.mxu0 %v1172
        %1491 = vmatpush.msra.mxu0 %v1171
        %1492 = vmatpush.msra.mxu0 %v1170
        %1493 = vmatpush.msra.mxu0 %v1169
        %1494 = vmatpush.msra.mxu0 %v1168
        %1495 = vmatpush.msra.mxu0 %v1167
        %1496 = vmatmul.f32.gmra.mxu0 %v1386
        %v1497 = vpop.f32.mrf.mxu0
        %v1498 = vadd.f32 %v1442, %v1497
        %1499 = vmatmul.f32.gmra.mxu0 %v1389
        %v1500 = vpop.f32.mrf.mxu0
        %v1501 = vadd.f32 %v1445, %v1500
        %1502 = vmatmul.f32.gmra.mxu0 %v1392
        %v1503 = vpop.f32.mrf.mxu0
        %v1504 = vadd.f32 %v1448, %v1503
        %1505 = vmatmul.f32.gmra.mxu0 %v1395
        %v1506 = vpop.f32.mrf.mxu0
        %v1507 = vadd.f32 %v1451, %v1506
        %1508 = vmatmul.f32.gmra.mxu0 %v1398
        %v1509 = vpop.f32.mrf.mxu0
        %v1510 = vadd.f32 %v1454, %v1509
        %1511 = vmatmul.f32.gmra.mxu0 %v1401
        %v1512 = vpop.f32.mrf.mxu0
        %v1513 = vadd.f32 %v1457, %v1512
        %1514 = vmatmul.f32.gmra.mxu0 %v1404
        %v1515 = vpop.f32.mrf.mxu0
        %v1516 = vadd.f32 %v1460, %v1515
        %1517 = vmatmul.f32.gmra.mxu0 %v1407
        %v1518 = vpop.f32.mrf.mxu0
        %v1519 = vadd.f32 %v1463, %v1518
        %1520 = vmatmul.f32.gmra.mxu0 %v1410
        %v1521 = vpop.f32.mrf.mxu0
        %v1522 = vadd.f32 %v1466, %v1521
        %1523 = vmatmul.f32.gmra.mxu0 %v1413
        %v1524 = vpop.f32.mrf.mxu0
        %v1525 = vadd.f32 %v1469, %v1524
        %1526 = vmatmul.f32.gmra.mxu0 %v1416
        %v1527 = vpop.f32.mrf.mxu0
        %v1528 = vadd.f32 %v1472, %v1527
        %1529 = vmatmul.f32.gmra.mxu0 %v1419
        %v1530 = vpop.f32.mrf.mxu0
        %v1531 = vadd.f32 %v1475, %v1530
        %1532 = vmatmul.f32.gmra.mxu0 %v1422
        %v1533 = vpop.f32.mrf.mxu0
        %v1534 = vadd.f32 %v1478, %v1533
        %1535 = vdwg.mxu0
        %v1536 = vmax.f32 %v1321, %v1498
        %v1537 = vmax.f32 %v1324, %v1501
        %v1538 = vmax.f32 %v1327, %v1504
        %v1539 = vmax.f32 %v1330, %v1507
        %v1540 = vmax.f32 %v1333, %v1510
        %v1541 = vmax.f32 %v1336, %v1513
        %v1542 = vmax.f32 %v1339, %v1516
        %v1543 = vmax.f32 %v1342, %v1519
        %v1544 = vmax.f32 %v1345, %v1522
        %v1545 = vmax.f32 %v1348, %v1525
        %v1546 = vmax.f32 %v1351, %v1528
        %v1547 = vmax.f32 %v1354, %v1531
        %v1548 = vmax.f32 %v1357, %v1534
        %v1549 = vld [vmem:[%s6] sm:$0xff]
        %v1550 = vld [vmem:[%s6 + $0x8] sm:$0xff]
        %v1551 = vld [vmem:[%s6 + $0x10] sm:$0xff]
        %v1552 = vld [vmem:[%s6 + $0x18] sm:$0xff]
        %v1553 = vld [vmem:[%s6 + $0x20] sm:$0xff]
        %v1554 = vld [vmem:[%s6 + $0x28] sm:$0xff]
        %v1555 = vld [vmem:[%s6 + $0x30] sm:$0xff]
        %v1556 = vld [vmem:[%s6 + $0x38] sm:$0xff]
        %v1557 = vld [vmem:[%s6 + $0x40] sm:$0xff]
        %v1558 = vld [vmem:[%s6 + $0x48] sm:$0xff]
        %v1559 = vld [vmem:[%s6 + $0x50] sm:$0xff]
        %v1560 = vld [vmem:[%s6 + $0x58] sm:$0xff]
        %v1561 = vld [vmem:[%s6 + $0x60] sm:$0xff]
        %1563 = vset.pattern.permute.xlu0 0
        %1564 = vperm.xlu0 %1563, %v1549
        %v1565 = vpop.permute.xlu0 %1564
        %1568 = vset.pattern.permute.xlu0 0
        %1569 = vperm.xlu0 %1568, %v1550
        %v1570 = vpop.permute.xlu0 %1569
        %1573 = vset.pattern.permute.xlu0 0
        %1574 = vperm.xlu0 %1573, %v1551
        %v1575 = vpop.permute.xlu0 %1574
        %1578 = vset.pattern.permute.xlu0 0
        %1579 = vperm.xlu0 %1578, %v1552
        %v1580 = vpop.permute.xlu0 %1579
        %1583 = vset.pattern.permute.xlu0 0
        %1584 = vperm.xlu0 %1583, %v1553
        %v1585 = vpop.permute.xlu0 %1584
        %1588 = vset.pattern.permute.xlu0 0
        %1589 = vperm.xlu0 %1588, %v1554
        %v1590 = vpop.permute.xlu0 %1589
        %1593 = vset.pattern.permute.xlu0 0
        %1594 = vperm.xlu0 %1593, %v1555
        %v1595 = vpop.permute.xlu0 %1594
        %1598 = vset.pattern.permute.xlu0 0
        %1599 = vperm.xlu0 %1598, %v1556
        %v1600 = vpop.permute.xlu0 %1599
        %1603 = vset.pattern.permute.xlu0 0
        %1604 = vperm.xlu0 %1603, %v1557
        %v1605 = vpop.permute.xlu0 %1604
        %1608 = vset.pattern.permute.xlu0 0
        %1609 = vperm.xlu0 %1608, %v1558
        %v1610 = vpop.permute.xlu0 %1609
        %1613 = vset.pattern.permute.xlu0 0
        %1614 = vperm.xlu0 %1613, %v1559
        %v1615 = vpop.permute.xlu0 %1614
        %1618 = vset.pattern.permute.xlu0 0
        %1619 = vperm.xlu0 %1618, %v1560
        %v1620 = vpop.permute.xlu0 %1619
        %1623 = vset.pattern.permute.xlu0 0
        %1624 = vperm.xlu0 %1623, %v1561
        %v1625 = vpop.permute.xlu0 %1624
        %v1627 = vadd.f32 %v1536, %v1565
        %v1628 = vadd.f32 %v1537, %v1570
        %v1629 = vadd.f32 %v1538, %v1575
        %v1630 = vadd.f32 %v1539, %v1580
        %v1631 = vadd.f32 %v1540, %v1585
        %v1632 = vadd.f32 %v1541, %v1590
        %v1633 = vadd.f32 %v1542, %v1595
        %v1634 = vadd.f32 %v1543, %v1600
        %v1635 = vadd.f32 %v1544, %v1605
        %v1636 = vadd.f32 %v1545, %v1610
        %v1637 = vadd.f32 %v1546, %v1615
        %v1638 = vadd.f32 %v1547, %v1620
        %v1639 = vadd.f32 %v1548, %v1625
        %v1640 = vmax.f32 %v1627, 0.0
        %v1641 = vmax.f32 %v1628, 0.0
        %v1642 = vmax.f32 %v1629, 0.0
        %v1643 = vmax.f32 %v1630, 0.0
        %v1644 = vmax.f32 %v1631, 0.0
        %v1645 = vmax.f32 %v1632, 0.0
        %v1646 = vmax.f32 %v1633, 0.0
        %v1647 = vmax.f32 %v1634, 0.0
        %v1648 = vmax.f32 %v1635, 0.0
        %v1649 = vmax.f32 %v1636, 0.0
        %v1650 = vmax.f32 %v1637, 0.0
        %v1651 = vmax.f32 %v1638, 0.0
        %v1652 = vmax.f32 %v1639, 0.0
        %v1653 = vld [vmem:[%s7] sm:$0xff]
        %v1654 = vld [vmem:[%s7 + $0x8] sm:$0xff]
        %v1655 = vld [vmem:[%s7 + $0x10] sm:$0xff]
        %v1656 = vld [vmem:[%s7 + $0x18] sm:$0xff]
        %v1657 = vld [vmem:[%s7 + $0x20] sm:$0xff]
        %v1658 = vld [vmem:[%s7 + $0x28] sm:$0xff]
        %v1659 = vld [vmem:[%s7 + $0x30] sm:$0xff]
        %v1660 = vld [vmem:[%s7 + $0x38] sm:$0xff]
        %v1661 = vld [vmem:[%s8] sm:$0xff]
        %v1662 = vld [vmem:[%s8 + $0x8] sm:$0xff]
        %v1663 = vld [vmem:[%s8 + $0x10] sm:$0xff]
        %v1664 = vld [vmem:[%s8 + $0x18] sm:$0xff]
        %v1665 = vld [vmem:[%s8 + $0x20] sm:$0xff]
        %v1666 = vld [vmem:[%s8 + $0x28] sm:$0xff]
        %v1667 = vld [vmem:[%s8 + $0x30] sm:$0xff]
        %v1668 = vld [vmem:[%s8 + $0x38] sm:$0xff]
        %1670 = vset.pattern.permute.xlu0 0
        %1671 = vperm.xlu0 %1670, %v1661
        %v1672 = vpop.permute.xlu0 %1671
        %1675 = vset.pattern.permute.xlu0 0
        %1676 = vperm.xlu0 %1675, %v1662
        %v1677 = vpop.permute.xlu0 %1676
        %1680 = vset.pattern.permute.xlu0 0
        %1681 = vperm.xlu0 %1680, %v1663
        %v1682 = vpop.permute.xlu0 %1681
        %1685 = vset.pattern.permute.xlu0 0
        %1686 = vperm.xlu0 %1685, %v1664
        %v1687 = vpop.permute.xlu0 %1686
        %1690 = vset.pattern.permute.xlu0 0
        %1691 = vperm.xlu0 %1690, %v1665
        %v1692 = vpop.permute.xlu0 %1691
        %1695 = vset.pattern.permute.xlu0 0
        %1696 = vperm.xlu0 %1695, %v1666
        %v1697 = vpop.permute.xlu0 %1696
        %1700 = vset.pattern.permute.xlu0 0
        %1701 = vperm.xlu0 %1700, %v1667
        %v1702 = vpop.permute.xlu0 %1701
        %1705 = vset.pattern.permute.xlu0 0
        %1706 = vperm.xlu0 %1705, %v1668
        %v1707 = vpop.permute.xlu0 %1706
        %vm1709 = vcmask 850944
        %v1711 = vsel %vm1709, %v1653, 0
        %v1714 = vsel %vm1709, %v1654, 0
        %v1717 = vsel %vm1709, %v1655, 0
        %v1720 = vsel %vm1709, %v1656, 0
        %v1723 = vsel %vm1709, %v1657, 0
        %v1726 = vsel %vm1709, %v1658, 0
        %v1729 = vsel %vm1709, %v1659, 0
        %v1732 = vsel %vm1709, %v1660, 0
        %1734 = vmatpush.msra.mxu0 0.0
        %1735 = vmatpush.msra.mxu0 0.0
        %1736 = vmatpush.msra.mxu0 0.0
        %1737 = vmatpush.msra.mxu0 %v1652
        %1738 = vmatpush.msra.mxu0 %v1651
        %1739 = vmatpush.msra.mxu0 %v1650
        %1740 = vmatpush.msra.mxu0 %v1649
        %1741 = vmatpush.msra.mxu0 %v1648
        %1742 = vmatpush.msra.mxu0 %v1647
        %1743 = vmatpush.msra.mxu0 %v1646
        %1744 = vmatpush.msra.mxu0 %v1645
        %1745 = vmatpush.msra.mxu0 %v1644
        %1746 = vmatpush.msra.mxu0 %v1643
        %1747 = vmatpush.msra.mxu0 %v1642
        %1748 = vmatpush.msra.mxu0 %v1641
        %1749 = vmatpush.msra.mxu0 %v1640
        %1750 = vmatmul.f32.gmra.mxu0 %v1711
        %v1751 = vpop.f32.mrf.mxu0
        %v1752 = vadd.f32 %v1672, %v1751
        %1753 = vmatmul.f32.gmra.mxu0 %v1714
        %v1754 = vpop.f32.mrf.mxu0
        %v1755 = vadd.f32 %v1677, %v1754
        %1756 = vmatmul.f32.gmra.mxu0 %v1717
        %v1757 = vpop.f32.mrf.mxu0
        %v1758 = vadd.f32 %v1682, %v1757
        %1759 = vmatmul.f32.gmra.mxu0 %v1720
        %v1760 = vpop.f32.mrf.mxu0
        %v1761 = vadd.f32 %v1687, %v1760
        %1762 = vmatmul.f32.gmra.mxu0 %v1723
        %v1763 = vpop.f32.mrf.mxu0
        %v1764 = vadd.f32 %v1692, %v1763
        %1765 = vmatmul.f32.gmra.mxu0 %v1726
        %v1766 = vpop.f32.mrf.mxu0
        %v1767 = vadd.f32 %v1697, %v1766
        %1768 = vmatmul.f32.gmra.mxu0 %v1729
        %v1769 = vpop.f32.mrf.mxu0
        %v1770 = vadd.f32 %v1702, %v1769
        %1771 = vmatmul.f32.gmra.mxu0 %v1732
        %v1772 = vpop.f32.mrf.mxu0
        %v1773 = vadd.f32 %v1707, %v1772
        %1774 = vdwg.mxu0
        %v1775 = vmax.f32 %v1752, 0.0
        %v1776 = vmax.f32 %v1755, 0.0
        %v1777 = vmax.f32 %v1758, 0.0
        %v1778 = vmax.f32 %v1761, 0.0
        %v1779 = vmax.f32 %v1764, 0.0
        %v1780 = vmax.f32 %v1767, 0.0
        %v1781 = vmax.f32 %v1770, 0.0
        %v1782 = vmax.f32 %v1773, 0.0
        %v1783 = vld [vmem:[%s9] sm:$0xff]
        %v1784 = vld [vmem:[%s9 + $0x8] sm:$0xff]
        %v1785 = vld [vmem:[%s9 + $0x10] sm:$0xff]
        %v1786 = vld [vmem:[%s9 + $0x18] sm:$0xff]
        %v1787 = vld [vmem:[%s10] sm:$0xff]
        %v1788 = vld [vmem:[%s10 + $0x8] sm:$0xff]
        %v1789 = vld [vmem:[%s10 + $0x10] sm:$0xff]
        %v1790 = vld [vmem:[%s10 + $0x18] sm:$0xff]
        %1792 = vset.pattern.permute.xlu0 0
        %1793 = vperm.xlu0 %1792, %v1787
        %v1794 = vpop.permute.xlu0 %1793
        %1797 = vset.pattern.permute.xlu0 0
        %1798 = vperm.xlu0 %1797, %v1788
        %v1799 = vpop.permute.xlu0 %1798
        %1802 = vset.pattern.permute.xlu0 0
        %1803 = vperm.xlu0 %1802, %v1789
        %v1804 = vpop.permute.xlu0 %1803
        %1807 = vset.pattern.permute.xlu0 0
        %1808 = vperm.xlu0 %1807, %v1790
        %v1809 = vpop.permute.xlu0 %1808
        %v1812 = vsel %vm486, %v1783, 0
        %v1815 = vsel %vm486, %v1784, 0
        %v1818 = vsel %vm486, %v1785, 0
        %v1821 = vsel %vm486, %v1786, 0
        %1823 = vmatpush.msra.mxu0 0.0
        %1824 = vmatpush.msra.mxu0 0.0
        %1825 = vmatpush.msra.mxu0 0.0
        %1826 = vmatpush.msra.mxu0 0.0
        %1827 = vmatpush.msra.mxu0 0.0
        %1828 = vmatpush.msra.mxu0 0.0
        %1829 = vmatpush.msra.mxu0 0.0
        %1830 = vmatpush.msra.mxu0 0.0
        %1831 = vmatpush.msra.mxu0 %v1782
        %1832 = vmatpush.msra.mxu0 %v1781
        %1833 = vmatpush.msra.mxu0 %v1780
        %1834 = vmatpush.msra.mxu0 %v1779
        %1835 = vmatpush.msra.mxu0 %v1778
        %1836 = vmatpush.msra.mxu0 %v1777
        %1837 = vmatpush.msra.mxu0 %v1776
        %1838 = vmatpush.msra.mxu0 %v1775
        %1839 = vmatmul.f32.gmra.mxu0 %v1812
        %v1840 = vpop.f32.mrf.mxu0
        %v1841 = vadd.f32 %v1794, %v1840
        %1842 = vmatmul.f32.gmra.mxu0 %v1815
        %v1843 = vpop.f32.mrf.mxu0
        %v1844 = vadd.f32 %v1799, %v1843
        %1845 = vmatmul.f32.gmra.mxu0 %v1818
        %v1846 = vpop.f32.mrf.mxu0
        %v1847 = vadd.f32 %v1804, %v1846
        %1848 = vmatmul.f32.gmra.mxu0 %v1821
        %v1849 = vpop.f32.mrf.mxu0
        %v1850 = vadd.f32 %v1809, %v1849
        %1851 = vdwg.mxu0
        %1852 = vst [vmem:[%s447] sm:$0xff] %v1841
        %1853 = vst [vmem:[%s447 + $0x8] sm:$0xff] %v1844
        %1854 = vst [vmem:[%s447 + $0x10] sm:$0xff] %v1847
        %1855 = vst [vmem:[%s447 + $0x18] sm:$0xff] %v1850
        %s1856 = sand.u32 %s269, 1
        %s1857 = scalar_lea.sflag [#allocation4], %s1856
        %s1858 = sand.u32 %s269, 1
        %s1859 = smul.addr %s1858, 32
        %s1860 = scalar_lea.vmem [#allocation3], %s1859
        // Predicated region
        $region103: #{tpu_custom_call.1} parent=97 // pred_check
          %p1861 = pneg %p279
        $region104: #{tpu_custom_call.1} parent=97 // pred_check_branch
          %1863 = sbr.rel (%p1861) target = $region106
        $region105: #{tpu_custom_call.1} parent=97 // pred_region
          %1865 = vsyncadd %s1857, 0
          %s1866 = smul.addr %s25, 8
          %s1867 = scalar_lea.hbm %s11, %s1866
          %s1868 = sshll.u32 %s1860, 4
          %s1869 = int_to_ptr.vmem [resolvable:$true] %s1868
          %s1870 = sshll.u32 %s1867, 4
          %s1871 = int_to_ptr.hbm [resolvable:$true] %s1870
          %1876 = dma.vmem_to_hbm [thread:$0]  %s1869, 512, %s1871, %s1857, 128, 256, 8
        $region106: #{tpu_custom_call.1} parent=97 // pred_fallthru
          _
      $region98: #{tpu_custom_call.1} parent=5 // pred_fallthru
        _
      %p1877 = scmp.le.s32.totalorder 2, %s20
      // Predicated region
      $region107: #{tpu_custom_call.1} parent=5 // pred_check
        %p1878 = pneg %p1877
      $region108: #{tpu_custom_call.1} parent=5 // pred_check_branch
        %1880 = sbr.rel (%p1878) target = $region110
      $region109: #{tpu_custom_call.1} parent=5 // pred_region
        %s1881 = ssub.s32 %s20, 2
        // Predicated region
        $region111: #{tpu_custom_call.1} parent=109 // pred_check
          %p1882 = pneg %p285
        $region112: #{tpu_custom_call.1} parent=109 // pred_check_branch
          %1884 = sbr.rel (%p1882) target = $region114
        $region113: #{tpu_custom_call.1} parent=109 // pred_region
          %s1885 = sand.u32 %s270, 1
          %s1886 = scalar_lea.sflag [#allocation4], %s1885
          %s1887 = sand.u32 %s270, 1
          %s1888 = smul.addr %s1887, 32
          %s1889 = scalar_lea.vmem [#allocation3], %s1888
          %1891 = dma.done %s1886, 512
        $region114: #{tpu_custom_call.1} parent=109 // pred_fallthru
          _
      $region110: #{tpu_custom_call.1} parent=5 // pred_fallthru
        _
    $region6: #{tpu_custom_call.1} parent=1 // loop_footer
      %s24 = sadd.s32 1, %s20
    $region7: #{tpu_custom_call.1} parent=1 // loop_footer_branch
      %19 = sbr.rel target = $region3
    $region8: #{tpu_custom_call.1} parent=1 // loop_exit
      _
    %1892 = vsyncpa [#allocation4], 1
    %s1893 = scalar_lea.sflag [#allocation4], 1
    %1894 = vsyncpa %s1893, 1

</llo_original>
